<compile_context>
chip_gen: v7x
topology: tpu7x:2x2x1
jax: 0.10.0
libtpu: 0.0.40
codegen_flags: <defaults>
</compile_context>

<pallas_src>
import functools
import math

import jax
import jax.numpy as jnp
from jax import lax
from jax.experimental import pallas as pl
from jax.experimental.pallas import tpu as pltpu

_BIG = 1e30  # finite "infinity": keeps padded rows / empty-negative anchors NaN-free


def _triplet_kernel(xr_ref, xc_ref, rmeta_ref, cmeta_ref, hinge_ref,
                    max_ap2, min_an2, *, margin):
    j = pl.program_id(1)

    @pl.when(j == 0)
    def _():
        max_ap2[...] = jnp.full(max_ap2.shape, -_BIG, dtype=jnp.float32)
        min_an2[...] = jnp.full(min_an2.shape, _BIG, dtype=jnp.float32)

    xr = xr_ref[...]                          # (TM, D) bf16 anchor features
    xc = xc_ref[...]                          # (TK, D) bf16 candidate features

    # gram[c, a] = <x_c, x_a>: candidates on sublanes, anchors on lanes.
    # bf16 inputs -> native single-pass MXU; f32 accumulation.
    gram = lax.dot_general(
        xc, xr,
        dimension_numbers=(((1,), (1,)), ((), ())),
        preferred_element_type=jnp.float32,
    )                                         # (TK, TM)

    rm = rmeta_ref[...]                       # (2, TM): [||x_a||^2 ; label_a]
    cm = cmeta_ref[...]                       # (TK, 2): [||x_c||^2 , label_c]
    sq_r, lab_r = rm[0:1, :], rm[1:2, :]      # (1, TM)
    sq_c, lab_c = cm[:, 0:1], cm[:, 1:2]      # (TK, 1)

    dist2 = sq_c + sq_r - 2.0 * gram          # (TK, TM) squared distances
    same = lab_c == lab_r                     # (TK, TM) same-class mask

    # Elementwise (VPU-only) running hard-mining accumulators on squared dists.
    max_ap2[...] = jnp.maximum(max_ap2[...], jnp.where(same, dist2, -_BIG))
    min_an2[...] = jnp.minimum(min_an2[...], jnp.where(same, _BIG, dist2))

    @pl.when(j == pl.num_programs(1) - 1)
    def _():
        # One cross-sublane reduce + 2*TM sqrts per ROW tile (not per step).
        ap2 = jnp.max(max_ap2[...], axis=0, keepdims=True)   # (1, TM)
        an2 = jnp.min(min_an2[...], axis=0, keepdims=True)   # (1, TM)
        d_ap = jnp.sqrt(jnp.maximum(ap2, 1e-12))
        d_an = jnp.sqrt(jnp.maximum(an2, 1e-12))
        # MarginRankingLoss(margin)(d_an, d_ap, y=1): max(0, d_ap - d_an + margin)
        hinge_ref[...] = jnp.maximum(d_ap - d_an + jnp.float32(margin), 0.0)


def _round_up(x, m):
    return (x + m - 1) // m * m


def _single_col_tile_ok(n_pad, tm, d, budget_bytes=12 * 1024 * 1024):
    """Conservative VMEM estimate for making the whole candidate axis one tile."""
    acc = 2 * n_pad * tm * 4                 # running max/min scratch
    inter = 6 * n_pad * tm * 4               # gram/dist2/mask/where intermediates
    feats = 2 * 2 * (n_pad + tm) * d * 2     # double-buffered bf16 feature tiles
    meta = 2 * 2 * (n_pad + tm) * 2 * 4      # packed norms/labels
    return acc + inter + feats + meta <= budget_bytes


def triplet_loss(inputs, targets, *, margin=0.3, block_m=256, block_k=256,
                 compute_dtype=jnp.bfloat16,
                 dimension_semantics=("parallel", "arbitrary")):
    """inputs: (N, D) float features; targets: (N,) int labels. Returns scalar loss.

    On v7x, pass dimension_semantics=(pltpu.CORE_PARALLEL, pltpu.ARBITRARY) to
    split anchor-row tiles across the two TensorCores.  Larger block_m cuts the
    candidate-stream HBM re-reads ((N/TM)*N*D) for big N.
    """
    # TODO(synk): only the default 'euclidean' branch of the module is implemented;
    # the 'consine' path is not.
    n, d = inputs.shape

    # Round features ONCE; norms come from the rounded values so the dist2
    # diagonal still cancels to ~0 under the bf16 MXU matmul.
    xq = inputs.astype(compute_dtype)
    x32 = xq.astype(jnp.float32)
    sq = jnp.sum(x32 * x32, axis=1)                     # (N,) f32
    t = targets.astype(jnp.int32)

    lane = 128
    tm = max(lane, _round_up(int(block_m), lane))
    tk = max(lane, _round_up(int(block_k), lane))
    n128 = _round_up(n, lane)
    tm = min(tm, n128)
    tk = min(tk, n128)
    n_pad = _round_up(n, math.lcm(tm, tk))

    # Small-N fast path: one resident column tile -> 1-D effective grid.
    if _single_col_tile_ok(n_pad, tm, d):
        tk = n_pad

    pad = n_pad - n
    if pad:
        sentinel = jnp.min(t) - 1                       # never matches a real label
        xq = jnp.pad(xq, ((0, pad), (0, 0)))            # zero features
        sq = jnp.concatenate([sq, jnp.full((pad,), _BIG, jnp.float32)])
        t = jnp.concatenate([t, jnp.full((pad,), sentinel, jnp.int32)])

    t_f = t.astype(jnp.float32)                         # exact for |label| < 2**24
    row_meta = jnp.stack([sq, t_f], axis=0)             # (2, N_pad)
    col_meta = jnp.stack([sq, t_f], axis=1)             # (N_pad, 2)

    grid = (n_pad // tm, n_pad // tk)

    hinge = pl.pallas_call(
        functools.partial(_triplet_kernel, margin=float(margin)),
        out_shape=jax.ShapeDtypeStruct((1, n_pad), jnp.float32),
        grid_spec=pltpu.PrefetchScalarGridSpec(
            num_scalar_prefetch=0,
            grid=grid,
            in_specs=[
                pl.BlockSpec((tm, d), lambda i, j: (i, 0)),   # anchors (per row tile)
                pl.BlockSpec((tk, d), lambda i, j: (j, 0)),   # candidates (per step)
                pl.BlockSpec((2, tm), lambda i, j: (0, i)),   # packed anchor norms+labels
                pl.BlockSpec((tk, 2), lambda i, j: (j, 0)),   # packed candidate norms+labels
            ],
            out_specs=pl.BlockSpec((1, tm), lambda i, j: (0, i)),   # lane-dense hinge
            scratch_shapes=[
                pltpu.VMEM((tk, tm), jnp.float32),   # running max dist2 | positives
                pltpu.VMEM((tk, tm), jnp.float32),   # running min dist2 | negatives
            ],
        ),
        compiler_params=pltpu.CompilerParams(
            dimension_semantics=tuple(dimension_semantics)),
    )(xq, xq, row_meta, col_meta)

    # Drop padded anchors; final tiny mean stays wrapper-side so the row axis can
    # be sharded across TensorCores.
    return jnp.mean(hinge[0, :n])


def _triplet_loss_ref(inputs, targets, margin=0.3):
    # Pure-JAX f32 reference mirroring the PyTorch module (euclidean branch).
    x = inputs.astype(jnp.float32)
    sq = jnp.sum(x * x, axis=1, keepdims=True)
    gram = jnp.dot(x, x.T, precision=lax.Precision.HIGHEST)
    dist = jnp.sqrt(jnp.maximum(sq + sq.T - 2.0 * gram, 1e-12))
    mask = targets[:, None] == targets[None, :]
    d_ap = jnp.max(jnp.where(mask, dist, -jnp.inf), axis=1)
    d_an = jnp.min(jnp.where(mask, jnp.inf, dist), axis=1)
    return jnp.mean(jnp.maximum(d_ap - d_an + margin, 0.0))


if __name__ == "__main__":
    key = jax.random.PRNGKey(0)

    # Test 1: 32 identities x 8 samples, feat_dim=32 (tile-aligned N).
    N, D = 256, 32
    inputs = jax.random.normal(key, (N, D), dtype=jnp.float32)
    targets = jnp.repeat(jnp.arange(N // 8, dtype=jnp.int32), 8)
    loss = triplet_loss(inputs, targets, margin=0.3)
    jax.block_until_ready(loss)
    ref = _triplet_loss_ref(inputs, targets, margin=0.3)
    # bf16 feature rounding can flip near-tie mined samples; tolerance reflects that.
    assert jnp.allclose(loss, ref, atol=5e-2, rtol=5e-2), (loss, ref)

    # Test 2: ragged N (exercises padding + sentinel-label path), 25 ids x 8.
    N2, D2 = 200, 48
    inputs2 = jax.random.normal(jax.random.PRNGKey(1), (N2, D2), dtype=jnp.float32)
    targets2 = jnp.repeat(jnp.arange(N2 // 8, dtype=jnp.int32), 8)
    loss2 = triplet_loss(inputs2, targets2, margin=0.3)
    jax.block_until_ready(loss2)
    ref2 = _triplet_loss_ref(inputs2, targets2, margin=0.3)
    assert jnp.allclose(loss2, ref2, atol=5e-2, rtol=5e-2), (loss2, ref2)

    print("KERNEL_OK")
</pallas_src>

<mosaic_0001>
module attributes {stable_mosaic.version = 11 : i64} {
  func.func @_triplet_kernel(%arg0: i32, %arg1: i32, %arg2: memref<256x32xbf16, #tpu.memory_space<vmem>>, %arg3: memref<256x32xbf16, #tpu.memory_space<vmem>>, %arg4: memref<2x256xf32, #tpu.memory_space<vmem>>, %arg5: memref<256x2xf32, #tpu.memory_space<vmem>>, %arg6: memref<1x256xf32, #tpu.memory_space<vmem>>, %arg7: memref<256x256xf32, #tpu.memory_space<vmem>>, %arg8: memref<256x256xf32, #tpu.memory_space<vmem>>) attributes {dimension_semantics = [#tpu.dimension_semantics<parallel>, #tpu.dimension_semantics<arbitrary>], iteration_bounds = array<i64: 1, 1>, scalar_prefetch = 0 : i64, scratch_operands = 2 : i64, tpu.core_type = #tpu.core_type<tc>, window_params = [{transform_indices = @transform_0, window_bounds = array<i64: 256, 32>}, {transform_indices = @transform_1, window_bounds = array<i64: 256, 32>}, {transform_indices = @transform_2, window_bounds = array<i64: 2, 256>}, {transform_indices = @transform_3, window_bounds = array<i64: 256, 2>}, {transform_indices = @transform_4, window_bounds = array<i64: 1, 256>}]} {
    %c0_i32 = arith.constant 0 : i32
    %0 = arith.cmpi eq, %arg1, %c0_i32 : i32
    %1 = arith.extui %0 : i1 to i32
    %c0_i32_0 = arith.constant 0 : i32
    %2 = arith.cmpi ne, %1, %c0_i32_0 : i32
    scf.if %2 {
      %cst_21 = arith.constant -1.000000e+30 : f32
      %34 = vector.broadcast %cst_21 : f32 to vector<256x256xf32>
      %c0_22 = arith.constant 0 : index
      %c0_23 = arith.constant 0 : index
      %35 = vector.load %arg7[%c0_22, %c0_23] : memref<256x256xf32, #tpu.memory_space<vmem>>, vector<256x256xf32>
      tpu.vector_store %arg7[%c0_22, %c0_23], %34 {strides = array<i32>} : memref<256x256xf32, #tpu.memory_space<vmem>>, vector<256x256xf32>,
      %cst_24 = arith.constant 1.000000e+30 : f32
      %36 = vector.broadcast %cst_24 : f32 to vector<256x256xf32>
      %c0_25 = arith.constant 0 : index
      %c0_26 = arith.constant 0 : index
      %37 = vector.load %arg8[%c0_25, %c0_26] : memref<256x256xf32, #tpu.memory_space<vmem>>, vector<256x256xf32>
      tpu.vector_store %arg8[%c0_25, %c0_26], %36 {strides = array<i32>} : memref<256x256xf32, #tpu.memory_space<vmem>>, vector<256x256xf32>,
    } else {
    }
    %c0 = arith.constant 0 : index
    %c0_1 = arith.constant 0 : index
    %3 = vector.load %arg2[%c0, %c0_1] : memref<256x32xbf16, #tpu.memory_space<vmem>>, vector<256x32xbf16>
    %c0_2 = arith.constant 0 : index
    %c0_3 = arith.constant 0 : index
    %4 = vector.load %arg3[%c0_2, %c0_3] : memref<256x32xbf16, #tpu.memory_space<vmem>>, vector<256x32xbf16>
    %cst = arith.constant dense<0.000000e+00> : vector<256x256xf32>
    %5 = tpu.matmul %4, %3, %cst {dimension_numbers = #tpu.dot_dimension_numbers<[1], [1], [0], [0], [0, 0, 1, 0], [], []>} : vector<256x32xbf16>, vector<256x32xbf16>, vector<256x256xf32> -> vector<256x256xf32>
    %c0_4 = arith.constant 0 : index
    %c0_5 = arith.constant 0 : index
    %6 = vector.load %arg4[%c0_4, %c0_5] : memref<2x256xf32, #tpu.memory_space<vmem>>, vector<2x256xf32>
    %c0_6 = arith.constant 0 : index
    %c0_7 = arith.constant 0 : index
    %7 = vector.load %arg5[%c0_6, %c0_7] : memref<256x2xf32, #tpu.memory_space<vmem>>, vector<256x2xf32>
    %8 = vector.extract_strided_slice %6 {offsets = [0, 0], sizes = [1, 256], strides = [1, 1]} : vector<2x256xf32> to vector<1x256xf32>
    %9 = vector.extract_strided_slice %6 {offsets = [1, 0], sizes = [1, 256], strides = [1, 1]} : vector<2x256xf32> to vector<1x256xf32>
    %10 = vector.extract_strided_slice %7 {offsets = [0, 0], sizes = [256, 1], strides = [1, 1]} : vector<256x2xf32> to vector<256x1xf32>
    %11 = vector.extract_strided_slice %7 {offsets = [0, 1], sizes = [256, 1], strides = [1, 1]} : vector<256x2xf32> to vector<256x1xf32>
    %12 = vector.broadcast %10 : vector<256x1xf32> to vector<256x256xf32>
    %13 = vector.broadcast %8 : vector<1x256xf32> to vector<256x256xf32>
    %14 = arith.addf %12, %13 : vector<256x256xf32>
    %cst_8 = arith.constant 2.000000e+00 : f32
    %15 = vector.broadcast %cst_8 : f32 to vector<256x256xf32>
    %16 = arith.mulf %15, %5 : vector<256x256xf32>
    %17 = arith.subf %14, %16 : vector<256x256xf32>
    %18 = vector.broadcast %11 : vector<256x1xf32> to vector<256x256xf32>
    %19 = vector.broadcast %9 : vector<1x256xf32> to vector<256x256xf32>
    %20 = arith.cmpf oeq, %18, %19 : vector<256x256xf32>
    %c0_9 = arith.constant 0 : index
    %c0_10 = arith.constant 0 : index
    %21 = vector.load %arg7[%c0_9, %c0_10] : memref<256x256xf32, #tpu.memory_space<vmem>>, vector<256x256xf32>
    %cst_11 = arith.constant -1.000000e+30 : f32
    %22 = vector.broadcast %cst_11 : f32 to vector<256x256xf32>
    %23 = arith.select %20, %17, %22 : vector<256x256xi1>, vector<256x256xf32>
    %24 = arith.maximumf %21, %23 : vector<256x256xf32>
    %c0_12 = arith.constant 0 : index
    %c0_13 = arith.constant 0 : index
    %25 = vector.load %arg7[%c0_12, %c0_13] : memref<256x256xf32, #tpu.memory_space<vmem>>, vector<256x256xf32>
    tpu.vector_store %arg7[%c0_12, %c0_13], %24 {strides = array<i32>} : memref<256x256xf32, #tpu.memory_space<vmem>>, vector<256x256xf32>,
    %c0_14 = arith.constant 0 : index
    %c0_15 = arith.constant 0 : index
    %26 = vector.load %arg8[%c0_14, %c0_15] : memref<256x256xf32, #tpu.memory_space<vmem>>, vector<256x256xf32>
    %cst_16 = arith.constant 1.000000e+30 : f32
    %27 = vector.broadcast %cst_16 : f32 to vector<256x256xf32>
    %28 = arith.select %20, %27, %17 : vector<256x256xi1>, vector<256x256xf32>
    %29 = arith.minimumf %26, %28 : vector<256x256xf32>
    %c0_17 = arith.constant 0 : index
    %c0_18 = arith.constant 0 : index
    %30 = vector.load %arg8[%c0_17, %c0_18] : memref<256x256xf32, #tpu.memory_space<vmem>>, vector<256x256xf32>
    tpu.vector_store %arg8[%c0_17, %c0_18], %29 {strides = array<i32>} : memref<256x256xf32, #tpu.memory_space<vmem>>, vector<256x256xf32>,
    %c0_i32_19 = arith.constant 0 : i32
    %31 = arith.cmpi eq, %arg1, %c0_i32_19 : i32
    %32 = arith.extui %31 : i1 to i32
    %c0_i32_20 = arith.constant 0 : i32
    %33 = arith.cmpi ne, %32, %c0_i32_20 : i32
    scf.if %33 {
      %c0_21 = arith.constant 0 : index
      %c0_22 = arith.constant 0 : index
      %34 = vector.load %arg7[%c0_21, %c0_22] : memref<256x256xf32, #tpu.memory_space<vmem>>, vector<256x256xf32>
      %cst_23 = arith.constant dense<0xFF800000> : vector<256xf32>
      %35 = vector.multi_reduction <maximumf>, %34, %cst_23 [0] : vector<256x256xf32> to vector<256xf32>
      %36 = vector.shape_cast %35 : vector<256xf32> to vector<1x256xf32>
      %c0_24 = arith.constant 0 : index
      %c0_25 = arith.constant 0 : index
      %37 = vector.load %arg8[%c0_24, %c0_25] : memref<256x256xf32, #tpu.memory_space<vmem>>, vector<256x256xf32>
      %cst_26 = arith.constant dense<0x7F800000> : vector<256xf32>
      %38 = vector.multi_reduction <minimumf>, %37, %cst_26 [0] : vector<256x256xf32> to vector<256xf32>
      %39 = vector.shape_cast %38 : vector<256xf32> to vector<1x256xf32>
      %cst_27 = arith.constant 9.99999996E-13 : f32
      %40 = vector.broadcast %cst_27 : f32 to vector<1x256xf32>
      %41 = arith.maximumf %36, %40 : vector<1x256xf32>
      %42 = math.sqrt %41 : vector<1x256xf32>
      %cst_28 = arith.constant 9.99999996E-13 : f32
      %43 = vector.broadcast %cst_28 : f32 to vector<1x256xf32>
      %44 = arith.maximumf %39, %43 : vector<1x256xf32>
      %45 = math.sqrt %44 : vector<1x256xf32>
      %46 = arith.subf %42, %45 : vector<1x256xf32>
      %cst_29 = arith.constant 3.000000e-01 : f32
      %47 = vector.broadcast %cst_29 : f32 to vector<1x256xf32>
      %48 = arith.addf %46, %47 : vector<1x256xf32>
      %cst_30 = arith.constant 0.000000e+00 : f32
      %49 = vector.broadcast %cst_30 : f32 to vector<1x256xf32>
      %50 = arith.maximumf %48, %49 : vector<1x256xf32>
      %c0_31 = arith.constant 0 : index
      %c0_32 = arith.constant 0 : index
      %51 = vector.load %arg6[%c0_31, %c0_32] : memref<1x256xf32, #tpu.memory_space<vmem>>, vector<1x256xf32>
      tpu.vector_store %arg6[%c0_31, %c0_32], %50 {strides = array<i32>} : memref<1x256xf32, #tpu.memory_space<vmem>>, vector<1x256xf32>,
    } else {
    }
    return
  }
  func.func @transform_0(%arg0: i32, %arg1: i32) -> (i32, i32) {
    %c0_i32 = arith.constant 0 : i32
    %c0_i32_0 = arith.constant 0 : i32
    return %arg0, %c0_i32 : i32, i32
  }
  func.func @transform_1(%arg0: i32, %arg1: i32) -> (i32, i32) {
    %c0_i32 = arith.constant 0 : i32
    %c0_i32_0 = arith.constant 0 : i32
    return %arg1, %c0_i32 : i32, i32
  }
  func.func @transform_2(%arg0: i32, %arg1: i32) -> (i32, i32) {
    %c0_i32 = arith.constant 0 : i32
    %c0_i32_0 = arith.constant 0 : i32
    return %c0_i32, %arg0 : i32, i32
  }
  func.func @transform_3(%arg0: i32, %arg1: i32) -> (i32, i32) {
    %c0_i32 = arith.constant 0 : i32
    %c0_i32_0 = arith.constant 0 : i32
    return %arg1, %c0_i32 : i32, i32
  }
  func.func @transform_4(%arg0: i32, %arg1: i32) -> (i32, i32) {
    %c0_i32 = arith.constant 0 : i32
    %c0_i32_0 = arith.constant 0 : i32
    return %c0_i32, %arg0 : i32, i32
  }
}

</mosaic_0001>

<llo_original>
// kernel: tpu_custom_call.1
$region0: #{tpu_custom_call.1}
  #allocation0 [shape = 'u32[]', space=smem, size = 0x4, offset = 0x4, fixed_abs, tag = 'smem constant byte address 0x4 - core index']
  #allocation1 [shape = 'u32[144,128]{1,0:T(1,128)}', space=vmem, size = 0x12000, scoped, tag = 'internal scratch']
  #allocation2 [shape = 'f32[256,256]{1,0:T(8,128)}', space=vmem, size = 0x40000, scoped, tag = 'scratch operand']
  #allocation3 [shape = 'f32[256,256]{1,0:T(8,128)}', space=vmem, size = 0x40000, scoped, tag = 'scratch operand']
  %s0 = inlined_call_operand.vmem [shape: bf16[256,32], index: 0, kind: input, shape index: {}]
  %s1 = inlined_call_operand.vmem [shape: bf16[256,32], index: 1, kind: input, shape index: {}]
  %s2 = inlined_call_operand.vmem [shape: f32[2,256], index: 2, kind: input, shape index: {}]
  %s3 = inlined_call_operand.vmem [shape: f32[256,2], index: 3, kind: input, shape index: {}]
  %s4 = inlined_call_operand.hbm [shape: f32[1,256], index: 4, kind: output, shape index: {}]
  %s5 = sld [smem:[#allocation0]]
  $region34: #{tpu_custom_call.1} parent=0
    _
  %s7 = ssub.s32 1, %s5
  %s8 = scalar_select 0, %s7, %s5
  $region1: #{tpu_custom_call.1} parent=0
    #allocation4 [shape = 'u8[1024]{0}', space=vmem, size = 0x400, scoped, tag = 'output window, operand 0, single buffered']
    #allocation5 [shape = 's32[1]{0}', space=sflag, size = 0x4, scoped, tag = 'scoped memory for tpu_custom_call.1']
    %9 = vsyncpa [#allocation5], 0
    // Predicated region
    $region2: #{tpu_custom_call.1} parent=1 // pred_check
      _
    $region3: #{tpu_custom_call.1} parent=1 // pred_check_branch
      %11 = sbr.rel (0) target = $region5
    $region4: #{tpu_custom_call.1} parent=1 // pred_region
      _
    $region5: #{tpu_custom_call.1} parent=1 // pred_fallthru
      _
    // Predicated region
    $region6: #{tpu_custom_call.1} parent=1 // pred_check
      _
    $region7: #{tpu_custom_call.1} parent=1 // pred_check_branch
      %13 = sbr.rel (0) target = $region9
    $region8: #{tpu_custom_call.1} parent=1 // pred_region
      _
    $region9: #{tpu_custom_call.1} parent=1 // pred_fallthru
      _
    // Predicated region
    $region10: #{tpu_custom_call.1} parent=1 // pred_check
      _
    $region11: #{tpu_custom_call.1} parent=1 // pred_check_branch
      %15 = sbr.rel (0) target = $region13
    $region12: #{tpu_custom_call.1} parent=1 // pred_region
      _
    $region13: #{tpu_custom_call.1} parent=1 // pred_fallthru
      _
    // Predicated region
    $region14: #{tpu_custom_call.1} parent=1 // pred_check
      _
    $region15: #{tpu_custom_call.1} parent=1 // pred_check_branch
      %17 = sbr.rel (0) target = $region17
    $region16: #{tpu_custom_call.1} parent=1 // pred_region
      _
    $region17: #{tpu_custom_call.1} parent=1 // pred_fallthru
      _
    %p19 = scmp.eq.s32.totalorder 0, 0
    // Predicated region
    $region18: #{tpu_custom_call.1} parent=1 // pred_check
      %p20 = pneg %p19
    $region19: #{tpu_custom_call.1} parent=1 // pred_check_branch
      %22 = sbr.rel (%p20) target = $region21
    $region20: #{tpu_custom_call.1} parent=1 // pred_region
      %23 = vst [vmem:[#allocation2] sm:$0xff] -1e+30
      %24 = vst [vmem:[#allocation2 + $0x8] sm:$0xff] -1e+30
      %25 = vst [vmem:[#allocation2 + $0x10] sm:$0xff] -1e+30
      %26 = vst [vmem:[#allocation2 + $0x18] sm:$0xff] -1e+30
      %27 = vst [vmem:[#allocation2 + $0x20] sm:$0xff] -1e+30
      %28 = vst [vmem:[#allocation2 + $0x28] sm:$0xff] -1e+30
      %29 = vst [vmem:[#allocation2 + $0x30] sm:$0xff] -1e+30
      %30 = vst [vmem:[#allocation2 + $0x38] sm:$0xff] -1e+30
      %31 = vst [vmem:[#allocation2 + $0x40] sm:$0xff] -1e+30
      %32 = vst [vmem:[#allocation2 + $0x48] sm:$0xff] -1e+30
      %33 = vst [vmem:[#allocation2 + $0x50] sm:$0xff] -1e+30
      %34 = vst [vmem:[#allocation2 + $0x58] sm:$0xff] -1e+30
      %35 = vst [vmem:[#allocation2 + $0x60] sm:$0xff] -1e+30
      %36 = vst [vmem:[#allocation2 + $0x68] sm:$0xff] -1e+30
      %37 = vst [vmem:[#allocation2 + $0x70] sm:$0xff] -1e+30
      %38 = vst [vmem:[#allocation2 + $0x78] sm:$0xff] -1e+30
      %39 = vst [vmem:[#allocation2 + $0x80] sm:$0xff] -1e+30
      %40 = vst [vmem:[#allocation2 + $0x88] sm:$0xff] -1e+30
      %41 = vst [vmem:[#allocation2 + $0x90] sm:$0xff] -1e+30
      %42 = vst [vmem:[#allocation2 + $0x98] sm:$0xff] -1e+30
      %43 = vst [vmem:[#allocation2 + $0xa0] sm:$0xff] -1e+30
      %44 = vst [vmem:[#allocation2 + $0xa8] sm:$0xff] -1e+30
      %45 = vst [vmem:[#allocation2 + $0xb0] sm:$0xff] -1e+30
      %46 = vst [vmem:[#allocation2 + $0xb8] sm:$0xff] -1e+30
      %47 = vst [vmem:[#allocation2 + $0xc0] sm:$0xff] -1e+30
      %48 = vst [vmem:[#allocation2 + $0xc8] sm:$0xff] -1e+30
      %49 = vst [vmem:[#allocation2 + $0xd0] sm:$0xff] -1e+30
      %50 = vst [vmem:[#allocation2 + $0xd8] sm:$0xff] -1e+30
      %51 = vst [vmem:[#allocation2 + $0xe0] sm:$0xff] -1e+30
      %52 = vst [vmem:[#allocation2 + $0xe8] sm:$0xff] -1e+30
      %53 = vst [vmem:[#allocation2 + $0xf0] sm:$0xff] -1e+30
      %54 = vst [vmem:[#allocation2 + $0xf8] sm:$0xff] -1e+30
      %55 = vst [vmem:[#allocation2 + $0x100] sm:$0xff] -1e+30
      %56 = vst [vmem:[#allocation2 + $0x108] sm:$0xff] -1e+30
      %57 = vst [vmem:[#allocation2 + $0x110] sm:$0xff] -1e+30
      %58 = vst [vmem:[#allocation2 + $0x118] sm:$0xff] -1e+30
      %59 = vst [vmem:[#allocation2 + $0x120] sm:$0xff] -1e+30
      %60 = vst [vmem:[#allocation2 + $0x128] sm:$0xff] -1e+30
      %61 = vst [vmem:[#allocation2 + $0x130] sm:$0xff] -1e+30
      %62 = vst [vmem:[#allocation2 + $0x138] sm:$0xff] -1e+30
      %63 = vst [vmem:[#allocation2 + $0x140] sm:$0xff] -1e+30
      %64 = vst [vmem:[#allocation2 + $0x148] sm:$0xff] -1e+30
      %65 = vst [vmem:[#allocation2 + $0x150] sm:$0xff] -1e+30
      %66 = vst [vmem:[#allocation2 + $0x158] sm:$0xff] -1e+30
      %67 = vst [vmem:[#allocation2 + $0x160] sm:$0xff] -1e+30
      %68 = vst [vmem:[#allocation2 + $0x168] sm:$0xff] -1e+30
      %69 = vst [vmem:[#allocation2 + $0x170] sm:$0xff] -1e+30
      %70 = vst [vmem:[#allocation2 + $0x178] sm:$0xff] -1e+30
      %71 = vst [vmem:[#allocation2 + $0x180] sm:$0xff] -1e+30
      %72 = vst [vmem:[#allocation2 + $0x188] sm:$0xff] -1e+30
      %73 = vst [vmem:[#allocation2 + $0x190] sm:$0xff] -1e+30
      %74 = vst [vmem:[#allocation2 + $0x198] sm:$0xff] -1e+30
      %75 = vst [vmem:[#allocation2 + $0x1a0] sm:$0xff] -1e+30
      %76 = vst [vmem:[#allocation2 + $0x1a8] sm:$0xff] -1e+30
      %77 = vst [vmem:[#allocation2 + $0x1b0] sm:$0xff] -1e+30
      %78 = vst [vmem:[#allocation2 + $0x1b8] sm:$0xff] -1e+30
      %79 = vst [vmem:[#allocation2 + $0x1c0] sm:$0xff] -1e+30
      %80 = vst [vmem:[#allocation2 + $0x1c8] sm:$0xff] -1e+30
      %81 = vst [vmem:[#allocation2 + $0x1d0] sm:$0xff] -1e+30
      %82 = vst [vmem:[#allocation2 + $0x1d8] sm:$0xff] -1e+30
      %83 = vst [vmem:[#allocation2 + $0x1e0] sm:$0xff] -1e+30
      %84 = vst [vmem:[#allocation2 + $0x1e8] sm:$0xff] -1e+30
      %85 = vst [vmem:[#allocation2 + $0x1f0] sm:$0xff] -1e+30
      %86 = vst [vmem:[#allocation2 + $0x1f8] sm:$0xff] -1e+30
      %87 = vst [vmem:[#allocation3] sm:$0xff] 1e+30
      %88 = vst [vmem:[#allocation3 + $0x8] sm:$0xff] 1e+30
      %89 = vst [vmem:[#allocation3 + $0x10] sm:$0xff] 1e+30
      %90 = vst [vmem:[#allocation3 + $0x18] sm:$0xff] 1e+30
      %91 = vst [vmem:[#allocation3 + $0x20] sm:$0xff] 1e+30
      %92 = vst [vmem:[#allocation3 + $0x28] sm:$0xff] 1e+30
      %93 = vst [vmem:[#allocation3 + $0x30] sm:$0xff] 1e+30
      %94 = vst [vmem:[#allocation3 + $0x38] sm:$0xff] 1e+30
      %95 = vst [vmem:[#allocation3 + $0x40] sm:$0xff] 1e+30
      %96 = vst [vmem:[#allocation3 + $0x48] sm:$0xff] 1e+30
      %97 = vst [vmem:[#allocation3 + $0x50] sm:$0xff] 1e+30
      %98 = vst [vmem:[#allocation3 + $0x58] sm:$0xff] 1e+30
      %99 = vst [vmem:[#allocation3 + $0x60] sm:$0xff] 1e+30
      %100 = vst [vmem:[#allocation3 + $0x68] sm:$0xff] 1e+30
      %101 = vst [vmem:[#allocation3 + $0x70] sm:$0xff] 1e+30
      %102 = vst [vmem:[#allocation3 + $0x78] sm:$0xff] 1e+30
      %103 = vst [vmem:[#allocation3 + $0x80] sm:$0xff] 1e+30
      %104 = vst [vmem:[#allocation3 + $0x88] sm:$0xff] 1e+30
      %105 = vst [vmem:[#allocation3 + $0x90] sm:$0xff] 1e+30
      %106 = vst [vmem:[#allocation3 + $0x98] sm:$0xff] 1e+30
      %107 = vst [vmem:[#allocation3 + $0xa0] sm:$0xff] 1e+30
      %108 = vst [vmem:[#allocation3 + $0xa8] sm:$0xff] 1e+30
      %109 = vst [vmem:[#allocation3 + $0xb0] sm:$0xff] 1e+30
      %110 = vst [vmem:[#allocation3 + $0xb8] sm:$0xff] 1e+30
      %111 = vst [vmem:[#allocation3 + $0xc0] sm:$0xff] 1e+30
      %112 = vst [vmem:[#allocation3 + $0xc8] sm:$0xff] 1e+30
      %113 = vst [vmem:[#allocation3 + $0xd0] sm:$0xff] 1e+30
      %114 = vst [vmem:[#allocation3 + $0xd8] sm:$0xff] 1e+30
      %115 = vst [vmem:[#allocation3 + $0xe0] sm:$0xff] 1e+30
      %116 = vst [vmem:[#allocation3 + $0xe8] sm:$0xff] 1e+30
      %117 = vst [vmem:[#allocation3 + $0xf0] sm:$0xff] 1e+30
      %118 = vst [vmem:[#allocation3 + $0xf8] sm:$0xff] 1e+30
      %119 = vst [vmem:[#allocation3 + $0x100] sm:$0xff] 1e+30
      %120 = vst [vmem:[#allocation3 + $0x108] sm:$0xff] 1e+30
      %121 = vst [vmem:[#allocation3 + $0x110] sm:$0xff] 1e+30
      %122 = vst [vmem:[#allocation3 + $0x118] sm:$0xff] 1e+30
      %123 = vst [vmem:[#allocation3 + $0x120] sm:$0xff] 1e+30
      %124 = vst [vmem:[#allocation3 + $0x128] sm:$0xff] 1e+30
      %125 = vst [vmem:[#allocation3 + $0x130] sm:$0xff] 1e+30
      %126 = vst [vmem:[#allocation3 + $0x138] sm:$0xff] 1e+30
      %127 = vst [vmem:[#allocation3 + $0x140] sm:$0xff] 1e+30
      %128 = vst [vmem:[#allocation3 + $0x148] sm:$0xff] 1e+30
      %129 = vst [vmem:[#allocation3 + $0x150] sm:$0xff] 1e+30
      %130 = vst [vmem:[#allocation3 + $0x158] sm:$0xff] 1e+30
      %131 = vst [vmem:[#allocation3 + $0x160] sm:$0xff] 1e+30
      %132 = vst [vmem:[#allocation3 + $0x168] sm:$0xff] 1e+30
      %133 = vst [vmem:[#allocation3 + $0x170] sm:$0xff] 1e+30
      %134 = vst [vmem:[#allocation3 + $0x178] sm:$0xff] 1e+30
      %135 = vst [vmem:[#allocation3 + $0x180] sm:$0xff] 1e+30
      %136 = vst [vmem:[#allocation3 + $0x188] sm:$0xff] 1e+30
      %137 = vst [vmem:[#allocation3 + $0x190] sm:$0xff] 1e+30
      %138 = vst [vmem:[#allocation3 + $0x198] sm:$0xff] 1e+30
      %139 = vst [vmem:[#allocation3 + $0x1a0] sm:$0xff] 1e+30
      %140 = vst [vmem:[#allocation3 + $0x1a8] sm:$0xff] 1e+30
      %141 = vst [vmem:[#allocation3 + $0x1b0] sm:$0xff] 1e+30
      %142 = vst [vmem:[#allocation3 + $0x1b8] sm:$0xff] 1e+30
      %143 = vst [vmem:[#allocation3 + $0x1c0] sm:$0xff] 1e+30
      %144 = vst [vmem:[#allocation3 + $0x1c8] sm:$0xff] 1e+30
      %145 = vst [vmem:[#allocation3 + $0x1d0] sm:$0xff] 1e+30
      %146 = vst [vmem:[#allocation3 + $0x1d8] sm:$0xff] 1e+30
      %147 = vst [vmem:[#allocation3 + $0x1e0] sm:$0xff] 1e+30
      %148 = vst [vmem:[#allocation3 + $0x1e8] sm:$0xff] 1e+30
      %149 = vst [vmem:[#allocation3 + $0x1f0] sm:$0xff] 1e+30
      %150 = vst [vmem:[#allocation3 + $0x1f8] sm:$0xff] 1e+30
    $region21: #{tpu_custom_call.1} parent=1 // pred_fallthru
      _
    %v151 = vld [vmem:[%s0] sm:$0xf]
    %v152 = vld [vmem:[%s0 + $0x4] sm:$0xf]
    %v153 = vld [vmem:[%s0 + $0x8] sm:$0xf]
    %v154 = vld [vmem:[%s0 + $0xc] sm:$0xf]
    %v155 = vld [vmem:[%s0 + $0x10] sm:$0xf]
    %v156 = vld [vmem:[%s0 + $0x14] sm:$0xf]
    %v157 = vld [vmem:[%s0 + $0x18] sm:$0xf]
    %v158 = vld [vmem:[%s0 + $0x1c] sm:$0xf]
    %v159 = vld [vmem:[%s0 + $0x20] sm:$0xf]
    %v160 = vld [vmem:[%s0 + $0x24] sm:$0xf]
    %v161 = vld [vmem:[%s0 + $0x28] sm:$0xf]
    %v162 = vld [vmem:[%s0 + $0x2c] sm:$0xf]
    %v163 = vld [vmem:[%s0 + $0x30] sm:$0xf]
    %v164 = vld [vmem:[%s0 + $0x34] sm:$0xf]
    %v165 = vld [vmem:[%s0 + $0x38] sm:$0xf]
    %v166 = vld [vmem:[%s0 + $0x3c] sm:$0xf]
    %v167 = vld [vmem:[%s0 + $0x40] sm:$0xf]
    %v168 = vld [vmem:[%s0 + $0x44] sm:$0xf]
    %v169 = vld [vmem:[%s0 + $0x48] sm:$0xf]
    %v170 = vld [vmem:[%s0 + $0x4c] sm:$0xf]
    %v171 = vld [vmem:[%s0 + $0x50] sm:$0xf]
    %v172 = vld [vmem:[%s0 + $0x54] sm:$0xf]
    %v173 = vld [vmem:[%s0 + $0x58] sm:$0xf]
    %v174 = vld [vmem:[%s0 + $0x5c] sm:$0xf]
    %v175 = vld [vmem:[%s0 + $0x60] sm:$0xf]
    %v176 = vld [vmem:[%s0 + $0x64] sm:$0xf]
    %v177 = vld [vmem:[%s0 + $0x68] sm:$0xf]
    %v178 = vld [vmem:[%s0 + $0x6c] sm:$0xf]
    %v179 = vld [vmem:[%s0 + $0x70] sm:$0xf]
    %v180 = vld [vmem:[%s0 + $0x74] sm:$0xf]
    %v181 = vld [vmem:[%s0 + $0x78] sm:$0xf]
    %v182 = vld [vmem:[%s0 + $0x7c] sm:$0xf]
    %v183 = vld [vmem:[%s1] sm:$0xf]
    %v184 = vld [vmem:[%s1 + $0x4] sm:$0xf]
    %v185 = vld [vmem:[%s1 + $0x8] sm:$0xf]
    %v186 = vld [vmem:[%s1 + $0xc] sm:$0xf]
    %v187 = vld [vmem:[%s1 + $0x10] sm:$0xf]
    %v188 = vld [vmem:[%s1 + $0x14] sm:$0xf]
    %v189 = vld [vmem:[%s1 + $0x18] sm:$0xf]
    %v190 = vld [vmem:[%s1 + $0x1c] sm:$0xf]
    %v191 = vld [vmem:[%s1 + $0x20] sm:$0xf]
    %v192 = vld [vmem:[%s1 + $0x24] sm:$0xf]
    %v193 = vld [vmem:[%s1 + $0x28] sm:$0xf]
    %v194 = vld [vmem:[%s1 + $0x2c] sm:$0xf]
    %v195 = vld [vmem:[%s1 + $0x30] sm:$0xf]
    %v196 = vld [vmem:[%s1 + $0x34] sm:$0xf]
    %v197 = vld [vmem:[%s1 + $0x38] sm:$0xf]
    %v198 = vld [vmem:[%s1 + $0x3c] sm:$0xf]
    %v199 = vld [vmem:[%s1 + $0x40] sm:$0xf]
    %v200 = vld [vmem:[%s1 + $0x44] sm:$0xf]
    %v201 = vld [vmem:[%s1 + $0x48] sm:$0xf]
    %v202 = vld [vmem:[%s1 + $0x4c] sm:$0xf]
    %v203 = vld [vmem:[%s1 + $0x50] sm:$0xf]
    %v204 = vld [vmem:[%s1 + $0x54] sm:$0xf]
    %v205 = vld [vmem:[%s1 + $0x58] sm:$0xf]
    %v206 = vld [vmem:[%s1 + $0x5c] sm:$0xf]
    %v207 = vld [vmem:[%s1 + $0x60] sm:$0xf]
    %v208 = vld [vmem:[%s1 + $0x64] sm:$0xf]
    %v209 = vld [vmem:[%s1 + $0x68] sm:$0xf]
    %v210 = vld [vmem:[%s1 + $0x6c] sm:$0xf]
    %v211 = vld [vmem:[%s1 + $0x70] sm:$0xf]
    %v212 = vld [vmem:[%s1 + $0x74] sm:$0xf]
    %v213 = vld [vmem:[%s1 + $0x78] sm:$0xf]
    %v214 = vld [vmem:[%s1 + $0x7c] sm:$0xf]
    %v247 = vunpack.c.l.b16 %v183
    %v248 = vunpack.c.l.b16 %v184
    %v249 = vunpack.c.l.b16 %v185
    %v250 = vunpack.c.l.b16 %v186
    %v251 = vunpack.c.l.b16 %v187
    %v252 = vunpack.c.l.b16 %v188
    %v253 = vunpack.c.l.b16 %v189
    %v254 = vunpack.c.l.b16 %v190
    %v255 = vunpack.c.l.b16 %v191
    %v256 = vunpack.c.l.b16 %v192
    %v257 = vunpack.c.l.b16 %v193
    %v258 = vunpack.c.l.b16 %v194
    %v259 = vunpack.c.l.b16 %v195
    %v260 = vunpack.c.l.b16 %v196
    %v261 = vunpack.c.l.b16 %v197
    %v262 = vunpack.c.l.b16 %v198
    %v263 = vunpack.c.l.b16 %v199
    %v264 = vunpack.c.l.b16 %v200
    %v265 = vunpack.c.l.b16 %v201
    %v266 = vunpack.c.l.b16 %v202
    %v267 = vunpack.c.l.b16 %v203
    %v268 = vunpack.c.l.b16 %v204
    %v269 = vunpack.c.l.b16 %v205
    %v270 = vunpack.c.l.b16 %v206
    %v271 = vunpack.c.l.b16 %v207
    %v272 = vunpack.c.l.b16 %v208
    %v273 = vunpack.c.l.b16 %v209
    %v274 = vunpack.c.l.b16 %v210
    %v275 = vunpack.c.l.b16 %v211
    %v276 = vunpack.c.l.b16 %v212
    %v277 = vunpack.c.l.b16 %v213
    %v278 = vunpack.c.l.b16 %v214
    %v279 = vpack.c.b16 %v248, %v247
    %v280 = vpack.c.b16 %v250, %v249
    %v281 = vpack.c.b16 %v252, %v251
    %v282 = vpack.c.b16 %v254, %v253
    %v283 = vpack.c.b16 %v256, %v255
    %v284 = vpack.c.b16 %v258, %v257
    %v285 = vpack.c.b16 %v260, %v259
    %v286 = vpack.c.b16 %v262, %v261
    %v287 = vpack.c.b16 %v264, %v263
    %v288 = vpack.c.b16 %v266, %v265
    %v289 = vpack.c.b16 %v268, %v267
    %v290 = vpack.c.b16 %v270, %v269
    %v291 = vpack.c.b16 %v272, %v271
    %v292 = vpack.c.b16 %v274, %v273
    %v293 = vpack.c.b16 %v276, %v275
    %v294 = vpack.c.b16 %v278, %v277
    %v327 = vunpack.c.l.b16 %v151
    %v328 = vunpack.c.l.b16 %v152
    %v329 = vunpack.c.l.b16 %v153
    %v330 = vunpack.c.l.b16 %v154
    %v331 = vunpack.c.l.b16 %v155
    %v332 = vunpack.c.l.b16 %v156
    %v333 = vunpack.c.l.b16 %v157
    %v334 = vunpack.c.l.b16 %v158
    %v335 = vunpack.c.l.b16 %v159
    %v336 = vunpack.c.l.b16 %v160
    %v337 = vunpack.c.l.b16 %v161
    %v338 = vunpack.c.l.b16 %v162
    %v339 = vunpack.c.l.b16 %v163
    %v340 = vunpack.c.l.b16 %v164
    %v341 = vunpack.c.l.b16 %v165
    %v342 = vunpack.c.l.b16 %v166
    %v343 = vunpack.c.l.b16 %v167
    %v344 = vunpack.c.l.b16 %v168
    %v345 = vunpack.c.l.b16 %v169
    %v346 = vunpack.c.l.b16 %v170
    %v347 = vunpack.c.l.b16 %v171
    %v348 = vunpack.c.l.b16 %v172
    %v349 = vunpack.c.l.b16 %v173
    %v350 = vunpack.c.l.b16 %v174
    %v351 = vunpack.c.l.b16 %v175
    %v352 = vunpack.c.l.b16 %v176
    %v353 = vunpack.c.l.b16 %v177
    %v354 = vunpack.c.l.b16 %v178
    %v355 = vunpack.c.l.b16 %v179
    %v356 = vunpack.c.l.b16 %v180
    %v357 = vunpack.c.l.b16 %v181
    %v358 = vunpack.c.l.b16 %v182
    %v359 = vpack.c.b16 %v328, %v327
    %v360 = vpack.c.b16 %v330, %v329
    %v361 = vpack.c.b16 %v332, %v331
    %v362 = vpack.c.b16 %v334, %v333
    %v363 = vpack.c.b16 %v336, %v335
    %v364 = vpack.c.b16 %v338, %v337
    %v365 = vpack.c.b16 %v340, %v339
    %v366 = vpack.c.b16 %v342, %v341
    %v367 = vpack.c.b16 %v344, %v343
    %v368 = vpack.c.b16 %v346, %v345
    %v369 = vpack.c.b16 %v348, %v347
    %v370 = vpack.c.b16 %v350, %v349
    %v371 = vpack.c.b16 %v352, %v351
    %v372 = vpack.c.b16 %v354, %v353
    %v373 = vpack.c.b16 %v356, %v355
    %v374 = vpack.c.b16 %v358, %v357
    %vm375 = vcmask 261120
    %v377 = vsel %vm375, %v279, 0
    %v380 = vsel %vm375, %v280, 0
    %v383 = vsel %vm375, %v281, 0
    %v386 = vsel %vm375, %v282, 0
    %v389 = vsel %vm375, %v283, 0
    %v392 = vsel %vm375, %v284, 0
    %v395 = vsel %vm375, %v285, 0
    %v398 = vsel %vm375, %v286, 0
    %v401 = vsel %vm375, %v287, 0
    %v404 = vsel %vm375, %v288, 0
    %v407 = vsel %vm375, %v289, 0
    %v410 = vsel %vm375, %v290, 0
    %v413 = vsel %vm375, %v291, 0
    %v416 = vsel %vm375, %v292, 0
    %v419 = vsel %vm375, %v293, 0
    %v422 = vsel %vm375, %v294, 0
    %v425 = vsel %vm375, %v359, 0
    %v428 = vsel %vm375, %v360, 0
    %v431 = vsel %vm375, %v361, 0
    %v434 = vsel %vm375, %v362, 0
    %v437 = vsel %vm375, %v363, 0
    %v440 = vsel %vm375, %v364, 0
    %v443 = vsel %vm375, %v365, 0
    %v446 = vsel %vm375, %v366, 0
    %v449 = vsel %vm375, %v367, 0
    %v452 = vsel %vm375, %v368, 0
    %v455 = vsel %vm375, %v369, 0
    %v458 = vsel %vm375, %v370, 0
    %v461 = vsel %vm375, %v371, 0
    %v464 = vsel %vm375, %v372, 0
    %v467 = vsel %vm375, %v373, 0
    %v470 = vsel %vm375, %v374, 0
    %472 = vmatprep.subr.bf16.mxu0 0
    %473 = vmatpush1.bf16.xpose.msra.mxu0 %v425
    %474 = vmatprep.subr.bf16.mxu0 0
    %475 = vmatpush1.bf16.xpose.msra.mxu0 %v428
    %476 = vmatprep.subr.bf16.mxu0 0
    %477 = vmatpush1.bf16.xpose.msra.mxu0 %v431
    %478 = vmatprep.subr.bf16.mxu0 0
    %479 = vmatpush1.bf16.xpose.msra.mxu0 %v434
    %480 = vmatprep.subr.bf16.mxu0 0
    %481 = vmatpush1.bf16.xpose.msra.mxu0 %v437
    %482 = vmatprep.subr.bf16.mxu0 0
    %483 = vmatpush1.bf16.xpose.msra.mxu0 %v440
    %484 = vmatprep.subr.bf16.mxu0 0
    %485 = vmatpush1.bf16.xpose.msra.mxu0 %v443
    %486 = vmatprep.subr.bf16.mxu0 0
    %487 = vmatpush1.bf16.xpose.msra.mxu0 %v446
    %488 = vmatprep.subr.bf16.mxu0 0
    %489 = vmatpush1.bf16.xpose.msra.mxu0 %v449
    %490 = vmatprep.subr.bf16.mxu0 0
    %491 = vmatpush1.bf16.xpose.msra.mxu0 %v452
    %492 = vmatprep.subr.bf16.mxu0 0
    %493 = vmatpush1.bf16.xpose.msra.mxu0 %v455
    %494 = vmatprep.subr.bf16.mxu0 0
    %495 = vmatpush1.bf16.xpose.msra.mxu0 %v458
    %496 = vmatprep.subr.bf16.mxu0 0
    %497 = vmatpush1.bf16.xpose.msra.mxu0 %v461
    %498 = vmatprep.subr.bf16.mxu0 0
    %499 = vmatpush1.bf16.xpose.msra.mxu0 %v464
    %500 = vmatprep.subr.bf16.mxu0 0
    %501 = vmatpush1.bf16.xpose.msra.mxu0 %v467
    %502 = vmatprep.subr.bf16.mxu0 0
    %503 = vmatpush1.bf16.xpose.msra.mxu0 %v470
    %504 = vmatprep.mubr.bf16.mxu0 0
    %505 = vmatmul.mubr.bf16.gmra.mrb[0].mxu0 %v377
    %v506 = vpop.f32.mrb[0].mxu0
    %v507 = vadd.f32 0.0, %v506
    %v508 = vpop.f32.mrb[0].mxu0
    %v509 = vadd.f32 0.0, %v508
    %v510 = vpop.f32.mrb[0].mxu0
    %v511 = vadd.f32 0.0, %v510
    %v512 = vpop.f32.mrb[0].mxu0
    %v513 = vadd.f32 0.0, %v512
    %514 = vmatprep.mubr.bf16.mxu0 0
    %515 = vmatmul.mubr.bf16.gmra.mrb[0].mxu0 %v380
    %v516 = vpop.f32.mrb[0].mxu0
    %v517 = vadd.f32 0.0, %v516
    %v518 = vpop.f32.mrb[0].mxu0
    %v519 = vadd.f32 0.0, %v518
    %v520 = vpop.f32.mrb[0].mxu0
    %v521 = vadd.f32 0.0, %v520
    %v522 = vpop.f32.mrb[0].mxu0
    %v523 = vadd.f32 0.0, %v522
    %524 = vmatprep.mubr.bf16.mxu0 0
    %525 = vmatmul.mubr.bf16.gmra.mrb[0].mxu0 %v383
    %v526 = vpop.f32.mrb[0].mxu0
    %v527 = vadd.f32 0.0, %v526
    %v528 = vpop.f32.mrb[0].mxu0
    %v529 = vadd.f32 0.0, %v528
    %v530 = vpop.f32.mrb[0].mxu0
    %v531 = vadd.f32 0.0, %v530
    %v532 = vpop.f32.mrb[0].mxu0
    %v533 = vadd.f32 0.0, %v532
    %534 = vmatprep.mubr.bf16.mxu0 0
    %535 = vmatmul.mubr.bf16.gmra.mrb[0].mxu0 %v386
    %v536 = vpop.f32.mrb[0].mxu0
    %v537 = vadd.f32 0.0, %v536
    %v538 = vpop.f32.mrb[0].mxu0
    %v539 = vadd.f32 0.0, %v538
    %v540 = vpop.f32.mrb[0].mxu0
    %v541 = vadd.f32 0.0, %v540
    %v542 = vpop.f32.mrb[0].mxu0
    %v543 = vadd.f32 0.0, %v542
    %544 = vmatprep.mubr.bf16.mxu0 0
    %545 = vmatmul.mubr.bf16.gmra.mrb[0].mxu0 %v389
    %v546 = vpop.f32.mrb[0].mxu0
    %v547 = vadd.f32 0.0, %v546
    %v548 = vpop.f32.mrb[0].mxu0
    %v549 = vadd.f32 0.0, %v548
    %v550 = vpop.f32.mrb[0].mxu0
    %v551 = vadd.f32 0.0, %v550
    %v552 = vpop.f32.mrb[0].mxu0
    %v553 = vadd.f32 0.0, %v552
    %554 = vmatprep.mubr.bf16.mxu0 0
    %555 = vmatmul.mubr.bf16.gmra.mrb[0].mxu0 %v392
    %v556 = vpop.f32.mrb[0].mxu0
    %v557 = vadd.f32 0.0, %v556
    %v558 = vpop.f32.mrb[0].mxu0
    %v559 = vadd.f32 0.0, %v558
    %v560 = vpop.f32.mrb[0].mxu0
    %v561 = vadd.f32 0.0, %v560
    %v562 = vpop.f32.mrb[0].mxu0
    %v563 = vadd.f32 0.0, %v562
    %564 = vmatprep.mubr.bf16.mxu0 0
    %565 = vmatmul.mubr.bf16.gmra.mrb[0].mxu0 %v395
    %v566 = vpop.f32.mrb[0].mxu0
    %v567 = vadd.f32 0.0, %v566
    %v568 = vpop.f32.mrb[0].mxu0
    %v569 = vadd.f32 0.0, %v568
    %v570 = vpop.f32.mrb[0].mxu0
    %v571 = vadd.f32 0.0, %v570
    %v572 = vpop.f32.mrb[0].mxu0
    %v573 = vadd.f32 0.0, %v572
    %574 = vmatprep.mubr.bf16.mxu0 0
    %575 = vmatmul.mubr.bf16.gmra.mrb[0].mxu0 %v398
    %v576 = vpop.f32.mrb[0].mxu0
    %v577 = vadd.f32 0.0, %v576
    %v578 = vpop.f32.mrb[0].mxu0
    %v579 = vadd.f32 0.0, %v578
    %v580 = vpop.f32.mrb[0].mxu0
    %v581 = vadd.f32 0.0, %v580
    %v582 = vpop.f32.mrb[0].mxu0
    %v583 = vadd.f32 0.0, %v582
    %584 = vmatprep.mubr.bf16.mxu0 0
    %585 = vmatmul.mubr.bf16.gmra.mrb[0].mxu0 %v401
    %v586 = vpop.f32.mrb[0].mxu0
    %v587 = vadd.f32 0.0, %v586
    %v588 = vpop.f32.mrb[0].mxu0
    %v589 = vadd.f32 0.0, %v588
    %v590 = vpop.f32.mrb[0].mxu0
    %v591 = vadd.f32 0.0, %v590
    %v592 = vpop.f32.mrb[0].mxu0
    %v593 = vadd.f32 0.0, %v592
    %594 = vmatprep.mubr.bf16.mxu0 0
    %595 = vmatmul.mubr.bf16.gmra.mrb[0].mxu0 %v404
    %v596 = vpop.f32.mrb[0].mxu0
    %v597 = vadd.f32 0.0, %v596
    %v598 = vpop.f32.mrb[0].mxu0
    %v599 = vadd.f32 0.0, %v598
    %v600 = vpop.f32.mrb[0].mxu0
    %v601 = vadd.f32 0.0, %v600
    %v602 = vpop.f32.mrb[0].mxu0
    %v603 = vadd.f32 0.0, %v602
    %604 = vmatprep.mubr.bf16.mxu0 0
    %605 = vmatmul.mubr.bf16.gmra.mrb[0].mxu0 %v407
    %v606 = vpop.f32.mrb[0].mxu0
    %v607 = vadd.f32 0.0, %v606
    %v608 = vpop.f32.mrb[0].mxu0
    %v609 = vadd.f32 0.0, %v608
    %v610 = vpop.f32.mrb[0].mxu0
    %v611 = vadd.f32 0.0, %v610
    %v612 = vpop.f32.mrb[0].mxu0
    %v613 = vadd.f32 0.0, %v612
    %614 = vmatprep.mubr.bf16.mxu0 0
    %615 = vmatmul.mubr.bf16.gmra.mrb[0].mxu0 %v410
    %v616 = vpop.f32.mrb[0].mxu0
    %v617 = vadd.f32 0.0, %v616
    %v618 = vpop.f32.mrb[0].mxu0
    %v619 = vadd.f32 0.0, %v618
    %v620 = vpop.f32.mrb[0].mxu0
    %v621 = vadd.f32 0.0, %v620
    %v622 = vpop.f32.mrb[0].mxu0
    %v623 = vadd.f32 0.0, %v622
    %624 = vmatprep.mubr.bf16.mxu0 0
    %625 = vmatmul.mubr.bf16.gmra.mrb[0].mxu0 %v413
    %v626 = vpop.f32.mrb[0].mxu0
    %v627 = vadd.f32 0.0, %v626
    %v628 = vpop.f32.mrb[0].mxu0
    %v629 = vadd.f32 0.0, %v628
    %v630 = vpop.f32.mrb[0].mxu0
    %v631 = vadd.f32 0.0, %v630
    %v632 = vpop.f32.mrb[0].mxu0
    %v633 = vadd.f32 0.0, %v632
    %634 = vmatprep.mubr.bf16.mxu0 0
    %635 = vmatmul.mubr.bf16.gmra.mrb[0].mxu0 %v416
    %v636 = vpop.f32.mrb[0].mxu0
    %v637 = vadd.f32 0.0, %v636
    %v638 = vpop.f32.mrb[0].mxu0
    %v639 = vadd.f32 0.0, %v638
    %v640 = vpop.f32.mrb[0].mxu0
    %v641 = vadd.f32 0.0, %v640
    %v642 = vpop.f32.mrb[0].mxu0
    %v643 = vadd.f32 0.0, %v642
    %644 = vmatprep.mubr.bf16.mxu0 0
    %645 = vmatmul.mubr.bf16.gmra.mrb[0].mxu0 %v419
    %v646 = vpop.f32.mrb[0].mxu0
    %v647 = vadd.f32 0.0, %v646
    %v648 = vpop.f32.mrb[0].mxu0
    %v649 = vadd.f32 0.0, %v648
    %v650 = vpop.f32.mrb[0].mxu0
    %v651 = vadd.f32 0.0, %v650
    %v652 = vpop.f32.mrb[0].mxu0
    %v653 = vadd.f32 0.0, %v652
    %654 = vmatprep.mubr.bf16.mxu0 0
    %655 = vmatmul.mubr.bf16.gmra.mrb[0].mxu0 %v422
    %v656 = vpop.f32.mrb[0].mxu0
    %v657 = vadd.f32 0.0, %v656
    %v658 = vpop.f32.mrb[0].mxu0
    %v659 = vadd.f32 0.0, %v658
    %v660 = vpop.f32.mrb[0].mxu0
    %v661 = vadd.f32 0.0, %v660
    %v662 = vpop.f32.mrb[0].mxu0
    %v663 = vadd.f32 0.0, %v662
    %664 = vdwg.mxu0
    %v665 = vld [vmem:[%s2] sm:$0xf]
    %v666 = vld [vmem:[%s3] sm:$0xff]
    %v667 = vld [vmem:[%s3 + $0x8] sm:$0xff]
    %v668 = vld [vmem:[%s3 + $0x10] sm:$0xff]
    %v669 = vld [vmem:[%s3 + $0x18] sm:$0xff]
    %v670 = vld [vmem:[%s3 + $0x20] sm:$0xff]
    %v671 = vld [vmem:[%s3 + $0x28] sm:$0xff]
    %v672 = vld [vmem:[%s3 + $0x30] sm:$0xff]
    %v673 = vld [vmem:[%s3 + $0x38] sm:$0xff]
    %v674 = vld [vmem:[%s3 + $0x40] sm:$0xff]
    %v675 = vld [vmem:[%s3 + $0x48] sm:$0xff]
    %v676 = vld [vmem:[%s3 + $0x50] sm:$0xff]
    %v677 = vld [vmem:[%s3 + $0x58] sm:$0xff]
    %v678 = vld [vmem:[%s3 + $0x60] sm:$0xff]
    %v679 = vld [vmem:[%s3 + $0x68] sm:$0xff]
    %v680 = vld [vmem:[%s3 + $0x70] sm:$0xff]
    %v681 = vld [vmem:[%s3 + $0x78] sm:$0xff]
    %v682 = vld [vmem:[%s3 + $0x80] sm:$0xff]
    %v683 = vld [vmem:[%s3 + $0x88] sm:$0xff]
    %v684 = vld [vmem:[%s3 + $0x90] sm:$0xff]
    %v685 = vld [vmem:[%s3 + $0x98] sm:$0xff]
    %v686 = vld [vmem:[%s3 + $0xa0] sm:$0xff]
    %v687 = vld [vmem:[%s3 + $0xa8] sm:$0xff]
    %v688 = vld [vmem:[%s3 + $0xb0] sm:$0xff]
    %v689 = vld [vmem:[%s3 + $0xb8] sm:$0xff]
    %v690 = vld [vmem:[%s3 + $0xc0] sm:$0xff]
    %v691 = vld [vmem:[%s3 + $0xc8] sm:$0xff]
    %v692 = vld [vmem:[%s3 + $0xd0] sm:$0xff]
    %v693 = vld [vmem:[%s3 + $0xd8] sm:$0xff]
    %v694 = vld [vmem:[%s3 + $0xe0] sm:$0xff]
    %v695 = vld [vmem:[%s3 + $0xe8] sm:$0xff]
    %v696 = vld [vmem:[%s3 + $0xf0] sm:$0xff]
    %v697 = vld [vmem:[%s3 + $0xf8] sm:$0xff]
    %699 = vset.pattern.permute.xlu0 0
    %700 = vperm.xlu0 %699, %v666
    %v701 = vpop.permute.xlu0 %700
    %704 = vset.pattern.permute.xlu0 0
    %705 = vperm.xlu0 %704, %v667
    %v706 = vpop.permute.xlu0 %705
    %709 = vset.pattern.permute.xlu0 0
    %710 = vperm.xlu0 %709, %v668
    %v711 = vpop.permute.xlu0 %710
    %714 = vset.pattern.permute.xlu0 0
    %715 = vperm.xlu0 %714, %v669
    %v716 = vpop.permute.xlu0 %715
    %719 = vset.pattern.permute.xlu0 0
    %720 = vperm.xlu0 %719, %v670
    %v721 = vpop.permute.xlu0 %720
    %724 = vset.pattern.permute.xlu0 0
    %725 = vperm.xlu0 %724, %v671
    %v726 = vpop.permute.xlu0 %725
    %729 = vset.pattern.permute.xlu0 0
    %730 = vperm.xlu0 %729, %v672
    %v731 = vpop.permute.xlu0 %730
    %734 = vset.pattern.permute.xlu0 0
    %735 = vperm.xlu0 %734, %v673
    %v736 = vpop.permute.xlu0 %735
    %739 = vset.pattern.permute.xlu0 0
    %740 = vperm.xlu0 %739, %v674
    %v741 = vpop.permute.xlu0 %740
    %744 = vset.pattern.permute.xlu0 0
    %745 = vperm.xlu0 %744, %v675
    %v746 = vpop.permute.xlu0 %745
    %749 = vset.pattern.permute.xlu0 0
    %750 = vperm.xlu0 %749, %v676
    %v751 = vpop.permute.xlu0 %750
    %754 = vset.pattern.permute.xlu0 0
    %755 = vperm.xlu0 %754, %v677
    %v756 = vpop.permute.xlu0 %755
    %759 = vset.pattern.permute.xlu0 0
    %760 = vperm.xlu0 %759, %v678
    %v761 = vpop.permute.xlu0 %760
    %764 = vset.pattern.permute.xlu0 0
    %765 = vperm.xlu0 %764, %v679
    %v766 = vpop.permute.xlu0 %765
    %769 = vset.pattern.permute.xlu0 0
    %770 = vperm.xlu0 %769, %v680
    %v771 = vpop.permute.xlu0 %770
    %774 = vset.pattern.permute.xlu0 0
    %775 = vperm.xlu0 %774, %v681
    %v776 = vpop.permute.xlu0 %775
    %779 = vset.pattern.permute.xlu0 0
    %780 = vperm.xlu0 %779, %v682
    %v781 = vpop.permute.xlu0 %780
    %784 = vset.pattern.permute.xlu0 0
    %785 = vperm.xlu0 %784, %v683
    %v786 = vpop.permute.xlu0 %785
    %789 = vset.pattern.permute.xlu0 0
    %790 = vperm.xlu0 %789, %v684
    %v791 = vpop.permute.xlu0 %790
    %794 = vset.pattern.permute.xlu0 0
    %795 = vperm.xlu0 %794, %v685
    %v796 = vpop.permute.xlu0 %795
    %799 = vset.pattern.permute.xlu0 0
    %800 = vperm.xlu0 %799, %v686
    %v801 = vpop.permute.xlu0 %800
    %804 = vset.pattern.permute.xlu0 0
    %805 = vperm.xlu0 %804, %v687
    %v806 = vpop.permute.xlu0 %805
    %809 = vset.pattern.permute.xlu0 0
    %810 = vperm.xlu0 %809, %v688
    %v811 = vpop.permute.xlu0 %810
    %814 = vset.pattern.permute.xlu0 0
    %815 = vperm.xlu0 %814, %v689
    %v816 = vpop.permute.xlu0 %815
    %819 = vset.pattern.permute.xlu0 0
    %820 = vperm.xlu0 %819, %v690
    %v821 = vpop.permute.xlu0 %820
    %824 = vset.pattern.permute.xlu0 0
    %825 = vperm.xlu0 %824, %v691
    %v826 = vpop.permute.xlu0 %825
    %829 = vset.pattern.permute.xlu0 0
    %830 = vperm.xlu0 %829, %v692
    %v831 = vpop.permute.xlu0 %830
    %834 = vset.pattern.permute.xlu0 0
    %835 = vperm.xlu0 %834, %v693
    %v836 = vpop.permute.xlu0 %835
    %839 = vset.pattern.permute.xlu0 0
    %840 = vperm.xlu0 %839, %v694
    %v841 = vpop.permute.xlu0 %840
    %844 = vset.pattern.permute.xlu0 0
    %845 = vperm.xlu0 %844, %v695
    %v846 = vpop.permute.xlu0 %845
    %849 = vset.pattern.permute.xlu0 0
    %850 = vperm.xlu0 %849, %v696
    %v851 = vpop.permute.xlu0 %850
    %854 = vset.pattern.permute.xlu0 0
    %855 = vperm.xlu0 %854, %v697
    %v856 = vpop.permute.xlu0 %855
    %v859 = vlaneseq
    %v860 = vshrl.u32 %v859, 7
    %v861 = vsub.s32 0, %v860
    %v862 = vrot.slane %v665, %v861
    %v863 = vlaneseq
    %v864 = vshrl.u32 %v863, 7
    %v865 = vsub.s32 2, %v864
    %v866 = vrot.slane %v665, %v865
    %v869 = vlaneseq
    %v870 = vshrl.u32 %v869, 7
    %v871 = vsub.s32 0, %v870
    %v872 = vrot.slane %v862, %v871
    %v873 = vlaneseq
    %v874 = vshrl.u32 %v873, 7
    %v875 = vsub.s32 0, %v874
    %v876 = vrot.slane %v866, %v875
    %v877 = vadd.f32 %v701, %v872
    %v878 = vadd.f32 %v701, %v876
    %v879 = vadd.f32 %v706, %v872
    %v880 = vadd.f32 %v706, %v876
    %v881 = vadd.f32 %v711, %v872
    %v882 = vadd.f32 %v711, %v876
    %v883 = vadd.f32 %v716, %v872
    %v884 = vadd.f32 %v716, %v876
    %v885 = vadd.f32 %v721, %v872
    %v886 = vadd.f32 %v721, %v876
    %v887 = vadd.f32 %v726, %v872
    %v888 = vadd.f32 %v726, %v876
    %v889 = vadd.f32 %v731, %v872
    %v890 = vadd.f32 %v731, %v876
    %v891 = vadd.f32 %v736, %v872
    %v892 = vadd.f32 %v736, %v876
    %v893 = vadd.f32 %v741, %v872
    %v894 = vadd.f32 %v741, %v876
    %v895 = vadd.f32 %v746, %v872
    %v896 = vadd.f32 %v746, %v876
    %v897 = vadd.f32 %v751, %v872
    %v898 = vadd.f32 %v751, %v876
    %v899 = vadd.f32 %v756, %v872
    %v900 = vadd.f32 %v756, %v876
    %v901 = vadd.f32 %v761, %v872
    %v902 = vadd.f32 %v761, %v876
    %v903 = vadd.f32 %v766, %v872
    %v904 = vadd.f32 %v766, %v876
    %v905 = vadd.f32 %v771, %v872
    %v906 = vadd.f32 %v771, %v876
    %v907 = vadd.f32 %v776, %v872
    %v908 = vadd.f32 %v776, %v876
    %v909 = vadd.f32 %v781, %v872
    %v910 = vadd.f32 %v781, %v876
    %v911 = vadd.f32 %v786, %v872
    %v912 = vadd.f32 %v786, %v876
    %v913 = vadd.f32 %v791, %v872
    %v914 = vadd.f32 %v791, %v876
    %v915 = vadd.f32 %v796, %v872
    %v916 = vadd.f32 %v796, %v876
    %v917 = vadd.f32 %v801, %v872
    %v918 = vadd.f32 %v801, %v876
    %v919 = vadd.f32 %v806, %v872
    %v920 = vadd.f32 %v806, %v876
    %v921 = vadd.f32 %v811, %v872
    %v922 = vadd.f32 %v811, %v876
    %v923 = vadd.f32 %v816, %v872
    %v924 = vadd.f32 %v816, %v876
    %v925 = vadd.f32 %v821, %v872
    %v926 = vadd.f32 %v821, %v876
    %v927 = vadd.f32 %v826, %v872
    %v928 = vadd.f32 %v826, %v876
    %v929 = vadd.f32 %v831, %v872
    %v930 = vadd.f32 %v831, %v876
    %v931 = vadd.f32 %v836, %v872
    %v932 = vadd.f32 %v836, %v876
    %v933 = vadd.f32 %v841, %v872
    %v934 = vadd.f32 %v841, %v876
    %v935 = vadd.f32 %v846, %v872
    %v936 = vadd.f32 %v846, %v876
    %v937 = vadd.f32 %v851, %v872
    %v938 = vadd.f32 %v851, %v876
    %v939 = vadd.f32 %v856, %v872
    %v940 = vadd.f32 %v856, %v876
    %v941 = vmul.f32 %v507, 2.0
    %v942 = vmul.f32 %v509, 2.0
    %v943 = vmul.f32 %v511, 2.0
    %v944 = vmul.f32 %v513, 2.0
    %v945 = vmul.f32 %v517, 2.0
    %v946 = vmul.f32 %v519, 2.0
    %v947 = vmul.f32 %v521, 2.0
    %v948 = vmul.f32 %v523, 2.0
    %v949 = vmul.f32 %v527, 2.0
    %v950 = vmul.f32 %v529, 2.0
    %v951 = vmul.f32 %v531, 2.0
    %v952 = vmul.f32 %v533, 2.0
    %v953 = vmul.f32 %v537, 2.0
    %v954 = vmul.f32 %v539, 2.0
    %v955 = vmul.f32 %v541, 2.0
    %v956 = vmul.f32 %v543, 2.0
    %v957 = vmul.f32 %v547, 2.0
    %v958 = vmul.f32 %v549, 2.0
    %v959 = vmul.f32 %v551, 2.0
    %v960 = vmul.f32 %v553, 2.0
    %v961 = vmul.f32 %v557, 2.0
    %v962 = vmul.f32 %v559, 2.0
    %v963 = vmul.f32 %v561, 2.0
    %v964 = vmul.f32 %v563, 2.0
    %v965 = vmul.f32 %v567, 2.0
    %v966 = vmul.f32 %v569, 2.0
    %v967 = vmul.f32 %v571, 2.0
    %v968 = vmul.f32 %v573, 2.0
    %v969 = vmul.f32 %v577, 2.0
    %v970 = vmul.f32 %v579, 2.0
    %v971 = vmul.f32 %v581, 2.0
    %v972 = vmul.f32 %v583, 2.0
    %v973 = vmul.f32 %v587, 2.0
    %v974 = vmul.f32 %v589, 2.0
    %v975 = vmul.f32 %v591, 2.0
    %v976 = vmul.f32 %v593, 2.0
    %v977 = vmul.f32 %v597, 2.0
    %v978 = vmul.f32 %v599, 2.0
    %v979 = vmul.f32 %v601, 2.0
    %v980 = vmul.f32 %v603, 2.0
    %v981 = vmul.f32 %v607, 2.0
    %v982 = vmul.f32 %v609, 2.0
    %v983 = vmul.f32 %v611, 2.0
    %v984 = vmul.f32 %v613, 2.0
    %v985 = vmul.f32 %v617, 2.0
    %v986 = vmul.f32 %v619, 2.0
    %v987 = vmul.f32 %v621, 2.0
    %v988 = vmul.f32 %v623, 2.0
    %v989 = vmul.f32 %v627, 2.0
    %v990 = vmul.f32 %v629, 2.0
    %v991 = vmul.f32 %v631, 2.0
    %v992 = vmul.f32 %v633, 2.0
    %v993 = vmul.f32 %v637, 2.0
    %v994 = vmul.f32 %v639, 2.0
    %v995 = vmul.f32 %v641, 2.0
    %v996 = vmul.f32 %v643, 2.0
    %v997 = vmul.f32 %v647, 2.0
    %v998 = vmul.f32 %v649, 2.0
    %v999 = vmul.f32 %v651, 2.0
    %v1000 = vmul.f32 %v653, 2.0
    %v1001 = vmul.f32 %v657, 2.0
    %v1002 = vmul.f32 %v659, 2.0
    %v1003 = vmul.f32 %v661, 2.0
    %v1004 = vmul.f32 %v663, 2.0
    %v1005 = vsub.f32 %v877, %v941
    %v1006 = vsub.f32 %v878, %v942
    %v1007 = vsub.f32 %v879, %v943
    %v1008 = vsub.f32 %v880, %v944
    %v1009 = vsub.f32 %v881, %v945
    %v1010 = vsub.f32 %v882, %v946
    %v1011 = vsub.f32 %v883, %v947
    %v1012 = vsub.f32 %v884, %v948
    %v1013 = vsub.f32 %v885, %v949
    %v1014 = vsub.f32 %v886, %v950
    %v1015 = vsub.f32 %v887, %v951
    %v1016 = vsub.f32 %v888, %v952
    %v1017 = vsub.f32 %v889, %v953
    %v1018 = vsub.f32 %v890, %v954
    %v1019 = vsub.f32 %v891, %v955
    %v1020 = vsub.f32 %v892, %v956
    %v1021 = vsub.f32 %v893, %v957
    %v1022 = vsub.f32 %v894, %v958
    %v1023 = vsub.f32 %v895, %v959
    %v1024 = vsub.f32 %v896, %v960
    %v1025 = vsub.f32 %v897, %v961
    %v1026 = vsub.f32 %v898, %v962
    %v1027 = vsub.f32 %v899, %v963
    %v1028 = vsub.f32 %v900, %v964
    %v1029 = vsub.f32 %v901, %v965
    %v1030 = vsub.f32 %v902, %v966
    %v1031 = vsub.f32 %v903, %v967
    %v1032 = vsub.f32 %v904, %v968
    %v1033 = vsub.f32 %v905, %v969
    %v1034 = vsub.f32 %v906, %v970
    %v1035 = vsub.f32 %v907, %v971
    %v1036 = vsub.f32 %v908, %v972
    %v1037 = vsub.f32 %v909, %v973
    %v1038 = vsub.f32 %v910, %v974
    %v1039 = vsub.f32 %v911, %v975
    %v1040 = vsub.f32 %v912, %v976
    %v1041 = vsub.f32 %v913, %v977
    %v1042 = vsub.f32 %v914, %v978
    %v1043 = vsub.f32 %v915, %v979
    %v1044 = vsub.f32 %v916, %v980
    %v1045 = vsub.f32 %v917, %v981
    %v1046 = vsub.f32 %v918, %v982
    %v1047 = vsub.f32 %v919, %v983
    %v1048 = vsub.f32 %v920, %v984
    %v1049 = vsub.f32 %v921, %v985
    %v1050 = vsub.f32 %v922, %v986
    %v1051 = vsub.f32 %v923, %v987
    %v1052 = vsub.f32 %v924, %v988
    %v1053 = vsub.f32 %v925, %v989
    %v1054 = vsub.f32 %v926, %v990
    %v1055 = vsub.f32 %v927, %v991
    %v1056 = vsub.f32 %v928, %v992
    %v1057 = vsub.f32 %v929, %v993
    %v1058 = vsub.f32 %v930, %v994
    %v1059 = vsub.f32 %v931, %v995
    %v1060 = vsub.f32 %v932, %v996
    %v1061 = vsub.f32 %v933, %v997
    %v1062 = vsub.f32 %v934, %v998
    %v1063 = vsub.f32 %v935, %v999
    %v1064 = vsub.f32 %v936, %v1000
    %v1065 = vsub.f32 %v937, %v1001
    %v1066 = vsub.f32 %v938, %v1002
    %v1067 = vsub.f32 %v939, %v1003
    %v1068 = vsub.f32 %v940, %v1004
    %1069 = vset.pattern.permute.xlu0 1
    %1070 = vperm.xlu0 %1069, %v666
    %v1071 = vpop.permute.xlu0 %1070
    %1073 = vset.pattern.permute.xlu0 1
    %1074 = vperm.xlu0 %1073, %v667
    %v1075 = vpop.permute.xlu0 %1074
    %1077 = vset.pattern.permute.xlu0 1
    %1078 = vperm.xlu0 %1077, %v668
    %v1079 = vpop.permute.xlu0 %1078
    %1081 = vset.pattern.permute.xlu0 1
    %1082 = vperm.xlu0 %1081, %v669
    %v1083 = vpop.permute.xlu0 %1082
    %1085 = vset.pattern.permute.xlu0 1
    %1086 = vperm.xlu0 %1085, %v670
    %v1087 = vpop.permute.xlu0 %1086
    %1089 = vset.pattern.permute.xlu0 1
    %1090 = vperm.xlu0 %1089, %v671
    %v1091 = vpop.permute.xlu0 %1090
    %1093 = vset.pattern.permute.xlu0 1
    %1094 = vperm.xlu0 %1093, %v672
    %v1095 = vpop.permute.xlu0 %1094
    %1097 = vset.pattern.permute.xlu0 1
    %1098 = vperm.xlu0 %1097, %v673
    %v1099 = vpop.permute.xlu0 %1098
    %1101 = vset.pattern.permute.xlu0 1
    %1102 = vperm.xlu0 %1101, %v674
    %v1103 = vpop.permute.xlu0 %1102
    %1105 = vset.pattern.permute.xlu0 1
    %1106 = vperm.xlu0 %1105, %v675
    %v1107 = vpop.permute.xlu0 %1106
    %1109 = vset.pattern.permute.xlu0 1
    %1110 = vperm.xlu0 %1109, %v676
    %v1111 = vpop.permute.xlu0 %1110
    %1113 = vset.pattern.permute.xlu0 1
    %1114 = vperm.xlu0 %1113, %v677
    %v1115 = vpop.permute.xlu0 %1114
    %1117 = vset.pattern.permute.xlu0 1
    %1118 = vperm.xlu0 %1117, %v678
    %v1119 = vpop.permute.xlu0 %1118
    %1121 = vset.pattern.permute.xlu0 1
    %1122 = vperm.xlu0 %1121, %v679
    %v1123 = vpop.permute.xlu0 %1122
    %1125 = vset.pattern.permute.xlu0 1
    %1126 = vperm.xlu0 %1125, %v680
    %v1127 = vpop.permute.xlu0 %1126
    %1129 = vset.pattern.permute.xlu0 1
    %1130 = vperm.xlu0 %1129, %v681
    %v1131 = vpop.permute.xlu0 %1130
    %1133 = vset.pattern.permute.xlu0 1
    %1134 = vperm.xlu0 %1133, %v682
    %v1135 = vpop.permute.xlu0 %1134
    %1137 = vset.pattern.permute.xlu0 1
    %1138 = vperm.xlu0 %1137, %v683
    %v1139 = vpop.permute.xlu0 %1138
    %1141 = vset.pattern.permute.xlu0 1
    %1142 = vperm.xlu0 %1141, %v684
    %v1143 = vpop.permute.xlu0 %1142
    %1145 = vset.pattern.permute.xlu0 1
    %1146 = vperm.xlu0 %1145, %v685
    %v1147 = vpop.permute.xlu0 %1146
    %1149 = vset.pattern.permute.xlu0 1
    %1150 = vperm.xlu0 %1149, %v686
    %v1151 = vpop.permute.xlu0 %1150
    %1153 = vset.pattern.permute.xlu0 1
    %1154 = vperm.xlu0 %1153, %v687
    %v1155 = vpop.permute.xlu0 %1154
    %1157 = vset.pattern.permute.xlu0 1
    %1158 = vperm.xlu0 %1157, %v688
    %v1159 = vpop.permute.xlu0 %1158
    %1161 = vset.pattern.permute.xlu0 1
    %1162 = vperm.xlu0 %1161, %v689
    %v1163 = vpop.permute.xlu0 %1162
    %1165 = vset.pattern.permute.xlu0 1
    %1166 = vperm.xlu0 %1165, %v690
    %v1167 = vpop.permute.xlu0 %1166
    %1169 = vset.pattern.permute.xlu0 1
    %1170 = vperm.xlu0 %1169, %v691
    %v1171 = vpop.permute.xlu0 %1170
    %1173 = vset.pattern.permute.xlu0 1
    %1174 = vperm.xlu0 %1173, %v692
    %v1175 = vpop.permute.xlu0 %1174
    %1177 = vset.pattern.permute.xlu0 1
    %1178 = vperm.xlu0 %1177, %v693
    %v1179 = vpop.permute.xlu0 %1178
    %1181 = vset.pattern.permute.xlu0 1
    %1182 = vperm.xlu0 %1181, %v694
    %v1183 = vpop.permute.xlu0 %1182
    %1185 = vset.pattern.permute.xlu0 1
    %1186 = vperm.xlu0 %1185, %v695
    %v1187 = vpop.permute.xlu0 %1186
    %1189 = vset.pattern.permute.xlu0 1
    %1190 = vperm.xlu0 %1189, %v696
    %v1191 = vpop.permute.xlu0 %1190
    %1193 = vset.pattern.permute.xlu0 1
    %1194 = vperm.xlu0 %1193, %v697
    %v1195 = vpop.permute.xlu0 %1194
    %v1197 = vlaneseq
    %v1198 = vshrl.u32 %v1197, 7
    %v1199 = vsub.s32 1, %v1198
    %v1200 = vrot.slane %v665, %v1199
    %v1201 = vlaneseq
    %v1202 = vshrl.u32 %v1201, 7
    %v1203 = vsub.s32 3, %v1202
    %v1204 = vrot.slane %v665, %v1203
    %v1207 = vlaneseq
    %v1208 = vshrl.u32 %v1207, 7
    %v1209 = vsub.s32 1, %v1208
    %v1210 = vrot.slane %v1200, %v1209
    %v1211 = vlaneseq
    %v1212 = vshrl.u32 %v1211, 7
    %v1213 = vsub.s32 1, %v1212
    %v1214 = vrot.slane %v1204, %v1213
    %vm1215 = vcmp.eq.f32.partialorder %v1071, %v1210
    %vm1216 = vcmp.eq.f32.partialorder %v1071, %v1214
    %vm1217 = vcmp.eq.f32.partialorder %v1075, %v1210
    %vm1218 = vcmp.eq.f32.partialorder %v1075, %v1214
    %vm1219 = vcmp.eq.f32.partialorder %v1079, %v1210
    %vm1220 = vcmp.eq.f32.partialorder %v1079, %v1214
    %vm1221 = vcmp.eq.f32.partialorder %v1083, %v1210
    %vm1222 = vcmp.eq.f32.partialorder %v1083, %v1214
    %vm1223 = vcmp.eq.f32.partialorder %v1087, %v1210
    %vm1224 = vcmp.eq.f32.partialorder %v1087, %v1214
    %vm1225 = vcmp.eq.f32.partialorder %v1091, %v1210
    %vm1226 = vcmp.eq.f32.partialorder %v1091, %v1214
    %vm1227 = vcmp.eq.f32.partialorder %v1095, %v1210
    %vm1228 = vcmp.eq.f32.partialorder %v1095, %v1214
    %vm1229 = vcmp.eq.f32.partialorder %v1099, %v1210
    %vm1230 = vcmp.eq.f32.partialorder %v1099, %v1214
    %vm1231 = vcmp.eq.f32.partialorder %v1103, %v1210
    %vm1232 = vcmp.eq.f32.partialorder %v1103, %v1214
    %vm1233 = vcmp.eq.f32.partialorder %v1107, %v1210
    %vm1234 = vcmp.eq.f32.partialorder %v1107, %v1214
    %vm1235 = vcmp.eq.f32.partialorder %v1111, %v1210
    %vm1236 = vcmp.eq.f32.partialorder %v1111, %v1214
    %vm1237 = vcmp.eq.f32.partialorder %v1115, %v1210
    %vm1238 = vcmp.eq.f32.partialorder %v1115, %v1214
    %vm1239 = vcmp.eq.f32.partialorder %v1119, %v1210
    %vm1240 = vcmp.eq.f32.partialorder %v1119, %v1214
    %vm1241 = vcmp.eq.f32.partialorder %v1123, %v1210
    %vm1242 = vcmp.eq.f32.partialorder %v1123, %v1214
    %vm1243 = vcmp.eq.f32.partialorder %v1127, %v1210
    %vm1244 = vcmp.eq.f32.partialorder %v1127, %v1214
    %vm1245 = vcmp.eq.f32.partialorder %v1131, %v1210
    %vm1246 = vcmp.eq.f32.partialorder %v1131, %v1214
    %vm1247 = vcmp.eq.f32.partialorder %v1135, %v1210
    %vm1248 = vcmp.eq.f32.partialorder %v1135, %v1214
    %vm1249 = vcmp.eq.f32.partialorder %v1139, %v1210
    %vm1250 = vcmp.eq.f32.partialorder %v1139, %v1214
    %vm1251 = vcmp.eq.f32.partialorder %v1143, %v1210
    %vm1252 = vcmp.eq.f32.partialorder %v1143, %v1214
    %vm1253 = vcmp.eq.f32.partialorder %v1147, %v1210
    %vm1254 = vcmp.eq.f32.partialorder %v1147, %v1214
    %vm1255 = vcmp.eq.f32.partialorder %v1151, %v1210
    %vm1256 = vcmp.eq.f32.partialorder %v1151, %v1214
    %vm1257 = vcmp.eq.f32.partialorder %v1155, %v1210
    %vm1258 = vcmp.eq.f32.partialorder %v1155, %v1214
    %vm1259 = vcmp.eq.f32.partialorder %v1159, %v1210
    %vm1260 = vcmp.eq.f32.partialorder %v1159, %v1214
    %vm1261 = vcmp.eq.f32.partialorder %v1163, %v1210
    %vm1262 = vcmp.eq.f32.partialorder %v1163, %v1214
    %vm1263 = vcmp.eq.f32.partialorder %v1167, %v1210
    %vm1264 = vcmp.eq.f32.partialorder %v1167, %v1214
    %vm1265 = vcmp.eq.f32.partialorder %v1171, %v1210
    %vm1266 = vcmp.eq.f32.partialorder %v1171, %v1214
    %vm1267 = vcmp.eq.f32.partialorder %v1175, %v1210
    %vm1268 = vcmp.eq.f32.partialorder %v1175, %v1214
    %vm1269 = vcmp.eq.f32.partialorder %v1179, %v1210
    %vm1270 = vcmp.eq.f32.partialorder %v1179, %v1214
    %vm1271 = vcmp.eq.f32.partialorder %v1183, %v1210
    %vm1272 = vcmp.eq.f32.partialorder %v1183, %v1214
    %vm1273 = vcmp.eq.f32.partialorder %v1187, %v1210
    %vm1274 = vcmp.eq.f32.partialorder %v1187, %v1214
    %vm1275 = vcmp.eq.f32.partialorder %v1191, %v1210
    %vm1276 = vcmp.eq.f32.partialorder %v1191, %v1214
    %vm1277 = vcmp.eq.f32.partialorder %v1195, %v1210
    %vm1278 = vcmp.eq.f32.partialorder %v1195, %v1214
    %v1279 = vld [vmem:[#allocation2] sm:$0xff]
    %v1280 = vld [vmem:[#allocation2 + $0x8] sm:$0xff]
    %v1281 = vld [vmem:[#allocation2 + $0x10] sm:$0xff]
    %v1282 = vld [vmem:[#allocation2 + $0x18] sm:$0xff]
    %v1283 = vld [vmem:[#allocation2 + $0x20] sm:$0xff]
    %v1284 = vld [vmem:[#allocation2 + $0x28] sm:$0xff]
    %v1285 = vld [vmem:[#allocation2 + $0x30] sm:$0xff]
    %v1286 = vld [vmem:[#allocation2 + $0x38] sm:$0xff]
    %v1287 = vld [vmem:[#allocation2 + $0x40] sm:$0xff]
    %v1288 = vld [vmem:[#allocation2 + $0x48] sm:$0xff]
    %v1289 = vld [vmem:[#allocation2 + $0x50] sm:$0xff]
    %v1290 = vld [vmem:[#allocation2 + $0x58] sm:$0xff]
    %v1291 = vld [vmem:[#allocation2 + $0x60] sm:$0xff]
    %v1292 = vld [vmem:[#allocation2 + $0x68] sm:$0xff]
    %v1293 = vld [vmem:[#allocation2 + $0x70] sm:$0xff]
    %v1294 = vld [vmem:[#allocation2 + $0x78] sm:$0xff]
    %v1295 = vld [vmem:[#allocation2 + $0x80] sm:$0xff]
    %v1296 = vld [vmem:[#allocation2 + $0x88] sm:$0xff]
    %v1297 = vld [vmem:[#allocation2 + $0x90] sm:$0xff]
    %v1298 = vld [vmem:[#allocation2 + $0x98] sm:$0xff]
    %v1299 = vld [vmem:[#allocation2 + $0xa0] sm:$0xff]
    %v1300 = vld [vmem:[#allocation2 + $0xa8] sm:$0xff]
    %v1301 = vld [vmem:[#allocation2 + $0xb0] sm:$0xff]
    %v1302 = vld [vmem:[#allocation2 + $0xb8] sm:$0xff]
    %v1303 = vld [vmem:[#allocation2 + $0xc0] sm:$0xff]
    %v1304 = vld [vmem:[#allocation2 + $0xc8] sm:$0xff]
    %v1305 = vld [vmem:[#allocation2 + $0xd0] sm:$0xff]
    %v1306 = vld [vmem:[#allocation2 + $0xd8] sm:$0xff]
    %v1307 = vld [vmem:[#allocation2 + $0xe0] sm:$0xff]
    %v1308 = vld [vmem:[#allocation2 + $0xe8] sm:$0xff]
    %v1309 = vld [vmem:[#allocation2 + $0xf0] sm:$0xff]
    %v1310 = vld [vmem:[#allocation2 + $0xf8] sm:$0xff]
    %v1311 = vld [vmem:[#allocation2 + $0x100] sm:$0xff]
    %v1312 = vld [vmem:[#allocation2 + $0x108] sm:$0xff]
    %v1313 = vld [vmem:[#allocation2 + $0x110] sm:$0xff]
    %v1314 = vld [vmem:[#allocation2 + $0x118] sm:$0xff]
    %v1315 = vld [vmem:[#allocation2 + $0x120] sm:$0xff]
    %v1316 = vld [vmem:[#allocation2 + $0x128] sm:$0xff]
    %v1317 = vld [vmem:[#allocation2 + $0x130] sm:$0xff]
    %v1318 = vld [vmem:[#allocation2 + $0x138] sm:$0xff]
    %v1319 = vld [vmem:[#allocation2 + $0x140] sm:$0xff]
    %v1320 = vld [vmem:[#allocation2 + $0x148] sm:$0xff]
    %v1321 = vld [vmem:[#allocation2 + $0x150] sm:$0xff]
    %v1322 = vld [vmem:[#allocation2 + $0x158] sm:$0xff]
    %v1323 = vld [vmem:[#allocation2 + $0x160] sm:$0xff]
    %v1324 = vld [vmem:[#allocation2 + $0x168] sm:$0xff]
    %v1325 = vld [vmem:[#allocation2 + $0x170] sm:$0xff]
    %v1326 = vld [vmem:[#allocation2 + $0x178] sm:$0xff]
    %v1327 = vld [vmem:[#allocation2 + $0x180] sm:$0xff]
    %v1328 = vld [vmem:[#allocation2 + $0x188] sm:$0xff]
    %v1329 = vld [vmem:[#allocation2 + $0x190] sm:$0xff]
    %v1330 = vld [vmem:[#allocation2 + $0x198] sm:$0xff]
    %v1331 = vld [vmem:[#allocation2 + $0x1a0] sm:$0xff]
    %v1332 = vld [vmem:[#allocation2 + $0x1a8] sm:$0xff]
    %v1333 = vld [vmem:[#allocation2 + $0x1b0] sm:$0xff]
    %v1334 = vld [vmem:[#allocation2 + $0x1b8] sm:$0xff]
    %v1335 = vld [vmem:[#allocation2 + $0x1c0] sm:$0xff]
    %v1336 = vld [vmem:[#allocation2 + $0x1c8] sm:$0xff]
    %v1337 = vld [vmem:[#allocation2 + $0x1d0] sm:$0xff]
    %v1338 = vld [vmem:[#allocation2 + $0x1d8] sm:$0xff]
    %v1339 = vld [vmem:[#allocation2 + $0x1e0] sm:$0xff]
    %v1340 = vld [vmem:[#allocation2 + $0x1e8] sm:$0xff]
    %v1341 = vld [vmem:[#allocation2 + $0x1f0] sm:$0xff]
    %v1342 = vld [vmem:[#allocation2 + $0x1f8] sm:$0xff]
    %v1343 = vsel %vm1215, %v1005, -1e+30
    %v1344 = vsel %vm1216, %v1006, -1e+30
    %v1345 = vsel %vm1217, %v1007, -1e+30
    %v1346 = vsel %vm1218, %v1008, -1e+30
    %v1347 = vsel %vm1219, %v1009, -1e+30
    %v1348 = vsel %vm1220, %v1010, -1e+30
    %v1349 = vsel %vm1221, %v1011, -1e+30
    %v1350 = vsel %vm1222, %v1012, -1e+30
    %v1351 = vsel %vm1223, %v1013, -1e+30
    %v1352 = vsel %vm1224, %v1014, -1e+30
    %v1353 = vsel %vm1225, %v1015, -1e+30
    %v1354 = vsel %vm1226, %v1016, -1e+30
    %v1355 = vsel %vm1227, %v1017, -1e+30
    %v1356 = vsel %vm1228, %v1018, -1e+30
    %v1357 = vsel %vm1229, %v1019, -1e+30
    %v1358 = vsel %vm1230, %v1020, -1e+30
    %v1359 = vsel %vm1231, %v1021, -1e+30
    %v1360 = vsel %vm1232, %v1022, -1e+30
    %v1361 = vsel %vm1233, %v1023, -1e+30
    %v1362 = vsel %vm1234, %v1024, -1e+30
    %v1363 = vsel %vm1235, %v1025, -1e+30
    %v1364 = vsel %vm1236, %v1026, -1e+30
    %v1365 = vsel %vm1237, %v1027, -1e+30
    %v1366 = vsel %vm1238, %v1028, -1e+30
    %v1367 = vsel %vm1239, %v1029, -1e+30
    %v1368 = vsel %vm1240, %v1030, -1e+30
    %v1369 = vsel %vm1241, %v1031, -1e+30
    %v1370 = vsel %vm1242, %v1032, -1e+30
    %v1371 = vsel %vm1243, %v1033, -1e+30
    %v1372 = vsel %vm1244, %v1034, -1e+30
    %v1373 = vsel %vm1245, %v1035, -1e+30
    %v1374 = vsel %vm1246, %v1036, -1e+30
    %v1375 = vsel %vm1247, %v1037, -1e+30
    %v1376 = vsel %vm1248, %v1038, -1e+30
    %v1377 = vsel %vm1249, %v1039, -1e+30
    %v1378 = vsel %vm1250, %v1040, -1e+30
    %v1379 = vsel %vm1251, %v1041, -1e+30
    %v1380 = vsel %vm1252, %v1042, -1e+30
    %v1381 = vsel %vm1253, %v1043, -1e+30
    %v1382 = vsel %vm1254, %v1044, -1e+30
    %v1383 = vsel %vm1255, %v1045, -1e+30
    %v1384 = vsel %vm1256, %v1046, -1e+30
    %v1385 = vsel %vm1257, %v1047, -1e+30
    %v1386 = vsel %vm1258, %v1048, -1e+30
    %v1387 = vsel %vm1259, %v1049, -1e+30
    %v1388 = vsel %vm1260, %v1050, -1e+30
    %v1389 = vsel %vm1261, %v1051, -1e+30
    %v1390 = vsel %vm1262, %v1052, -1e+30
    %v1391 = vsel %vm1263, %v1053, -1e+30
    %v1392 = vsel %vm1264, %v1054, -1e+30
    %v1393 = vsel %vm1265, %v1055, -1e+30
    %v1394 = vsel %vm1266, %v1056, -1e+30
    %v1395 = vsel %vm1267, %v1057, -1e+30
    %v1396 = vsel %vm1268, %v1058, -1e+30
    %v1397 = vsel %vm1269, %v1059, -1e+30
    %v1398 = vsel %vm1270, %v1060, -1e+30
    %v1399 = vsel %vm1271, %v1061, -1e+30
    %v1400 = vsel %vm1272, %v1062, -1e+30
    %v1401 = vsel %vm1273, %v1063, -1e+30
    %v1402 = vsel %vm1274, %v1064, -1e+30
    %v1403 = vsel %vm1275, %v1065, -1e+30
    %v1404 = vsel %vm1276, %v1066, -1e+30
    %v1405 = vsel %vm1277, %v1067, -1e+30
    %v1406 = vsel %vm1278, %v1068, -1e+30
    %v1407 = vmax.f32 %v1279, %v1343
    %v1408 = vmax.f32 %v1280, %v1344
    %v1409 = vmax.f32 %v1281, %v1345
    %v1410 = vmax.f32 %v1282, %v1346
    %v1411 = vmax.f32 %v1283, %v1347
    %v1412 = vmax.f32 %v1284, %v1348
    %v1413 = vmax.f32 %v1285, %v1349
    %v1414 = vmax.f32 %v1286, %v1350
    %v1415 = vmax.f32 %v1287, %v1351
    %v1416 = vmax.f32 %v1288, %v1352
    %v1417 = vmax.f32 %v1289, %v1353
    %v1418 = vmax.f32 %v1290, %v1354
    %v1419 = vmax.f32 %v1291, %v1355
    %v1420 = vmax.f32 %v1292, %v1356
    %v1421 = vmax.f32 %v1293, %v1357
    %v1422 = vmax.f32 %v1294, %v1358
    %v1423 = vmax.f32 %v1295, %v1359
    %v1424 = vmax.f32 %v1296, %v1360
    %v1425 = vmax.f32 %v1297, %v1361
    %v1426 = vmax.f32 %v1298, %v1362
    %v1427 = vmax.f32 %v1299, %v1363
    %v1428 = vmax.f32 %v1300, %v1364
    %v1429 = vmax.f32 %v1301, %v1365
    %v1430 = vmax.f32 %v1302, %v1366
    %v1431 = vmax.f32 %v1303, %v1367
    %v1432 = vmax.f32 %v1304, %v1368
    %v1433 = vmax.f32 %v1305, %v1369
    %v1434 = vmax.f32 %v1306, %v1370
    %v1435 = vmax.f32 %v1307, %v1371
    %v1436 = vmax.f32 %v1308, %v1372
    %v1437 = vmax.f32 %v1309, %v1373
    %v1438 = vmax.f32 %v1310, %v1374
    %v1439 = vmax.f32 %v1311, %v1375
    %v1440 = vmax.f32 %v1312, %v1376
    %v1441 = vmax.f32 %v1313, %v1377
    %v1442 = vmax.f32 %v1314, %v1378
    %v1443 = vmax.f32 %v1315, %v1379
    %v1444 = vmax.f32 %v1316, %v1380
    %v1445 = vmax.f32 %v1317, %v1381
    %v1446 = vmax.f32 %v1318, %v1382
    %v1447 = vmax.f32 %v1319, %v1383
    %v1448 = vmax.f32 %v1320, %v1384
    %v1449 = vmax.f32 %v1321, %v1385
    %v1450 = vmax.f32 %v1322, %v1386
    %v1451 = vmax.f32 %v1323, %v1387
    %v1452 = vmax.f32 %v1324, %v1388
    %v1453 = vmax.f32 %v1325, %v1389
    %v1454 = vmax.f32 %v1326, %v1390
    %v1455 = vmax.f32 %v1327, %v1391
    %v1456 = vmax.f32 %v1328, %v1392
    %v1457 = vmax.f32 %v1329, %v1393
    %v1458 = vmax.f32 %v1330, %v1394
    %v1459 = vmax.f32 %v1331, %v1395
    %v1460 = vmax.f32 %v1332, %v1396
    %v1461 = vmax.f32 %v1333, %v1397
    %v1462 = vmax.f32 %v1334, %v1398
    %v1463 = vmax.f32 %v1335, %v1399
    %v1464 = vmax.f32 %v1336, %v1400
    %v1465 = vmax.f32 %v1337, %v1401
    %v1466 = vmax.f32 %v1338, %v1402
    %v1467 = vmax.f32 %v1339, %v1403
    %v1468 = vmax.f32 %v1340, %v1404
    %v1469 = vmax.f32 %v1341, %v1405
    %v1470 = vmax.f32 %v1342, %v1406
    %1471 = vst [vmem:[#allocation2] sm:$0xff] %v1407
    %1472 = vst [vmem:[#allocation2 + $0x8] sm:$0xff] %v1408
    %1473 = vst [vmem:[#allocation2 + $0x10] sm:$0xff] %v1409
    %1474 = vst [vmem:[#allocation2 + $0x18] sm:$0xff] %v1410
    %1475 = vst [vmem:[#allocation2 + $0x20] sm:$0xff] %v1411
    %1476 = vst [vmem:[#allocation2 + $0x28] sm:$0xff] %v1412
    %1477 = vst [vmem:[#allocation2 + $0x30] sm:$0xff] %v1413
    %1478 = vst [vmem:[#allocation2 + $0x38] sm:$0xff] %v1414
    %1479 = vst [vmem:[#allocation2 + $0x40] sm:$0xff] %v1415
    %1480 = vst [vmem:[#allocation2 + $0x48] sm:$0xff] %v1416
    %1481 = vst [vmem:[#allocation2 + $0x50] sm:$0xff] %v1417
    %1482 = vst [vmem:[#allocation2 + $0x58] sm:$0xff] %v1418
    %1483 = vst [vmem:[#allocation2 + $0x60] sm:$0xff] %v1419
    %1484 = vst [vmem:[#allocation2 + $0x68] sm:$0xff] %v1420
    %1485 = vst [vmem:[#allocation2 + $0x70] sm:$0xff] %v1421
    %1486 = vst [vmem:[#allocation2 + $0x78] sm:$0xff] %v1422
    %1487 = vst [vmem:[#allocation2 + $0x80] sm:$0xff] %v1423
    %1488 = vst [vmem:[#allocation2 + $0x88] sm:$0xff] %v1424
    %1489 = vst [vmem:[#allocation2 + $0x90] sm:$0xff] %v1425
    %1490 = vst [vmem:[#allocation2 + $0x98] sm:$0xff] %v1426
    %1491 = vst [vmem:[#allocation2 + $0xa0] sm:$0xff] %v1427
    %1492 = vst [vmem:[#allocation2 + $0xa8] sm:$0xff] %v1428
    %1493 = vst [vmem:[#allocation2 + $0xb0] sm:$0xff] %v1429
    %1494 = vst [vmem:[#allocation2 + $0xb8] sm:$0xff] %v1430
    %1495 = vst [vmem:[#allocation2 + $0xc0] sm:$0xff] %v1431
    %1496 = vst [vmem:[#allocation2 + $0xc8] sm:$0xff] %v1432
    %1497 = vst [vmem:[#allocation2 + $0xd0] sm:$0xff] %v1433
    %1498 = vst [vmem:[#allocation2 + $0xd8] sm:$0xff] %v1434
    %1499 = vst [vmem:[#allocation2 + $0xe0] sm:$0xff] %v1435
    %1500 = vst [vmem:[#allocation2 + $0xe8] sm:$0xff] %v1436
    %1501 = vst [vmem:[#allocation2 + $0xf0] sm:$0xff] %v1437
    %1502 = vst [vmem:[#allocation2 + $0xf8] sm:$0xff] %v1438
    %1503 = vst [vmem:[#allocation2 + $0x100] sm:$0xff] %v1439
    %1504 = vst [vmem:[#allocation2 + $0x108] sm:$0xff] %v1440
    %1505 = vst [vmem:[#allocation2 + $0x110] sm:$0xff] %v1441
    %1506 = vst [vmem:[#allocation2 + $0x118] sm:$0xff] %v1442
    %1507 = vst [vmem:[#allocation2 + $0x120] sm:$0xff] %v1443
    %1508 = vst [vmem:[#allocation2 + $0x128] sm:$0xff] %v1444
    %1509 = vst [vmem:[#allocation2 + $0x130] sm:$0xff] %v1445
    %1510 = vst [vmem:[#allocation2 + $0x138] sm:$0xff] %v1446
    %1511 = vst [vmem:[#allocation2 + $0x140] sm:$0xff] %v1447
    %1512 = vst [vmem:[#allocation2 + $0x148] sm:$0xff] %v1448
    %1513 = vst [vmem:[#allocation2 + $0x150] sm:$0xff] %v1449
    %1514 = vst [vmem:[#allocation2 + $0x158] sm:$0xff] %v1450
    %1515 = vst [vmem:[#allocation2 + $0x160] sm:$0xff] %v1451
    %1516 = vst [vmem:[#allocation2 + $0x168] sm:$0xff] %v1452
    %1517 = vst [vmem:[#allocation2 + $0x170] sm:$0xff] %v1453
    %1518 = vst [vmem:[#allocation2 + $0x178] sm:$0xff] %v1454
    %1519 = vst [vmem:[#allocation2 + $0x180] sm:$0xff] %v1455
    %1520 = vst [vmem:[#allocation2 + $0x188] sm:$0xff] %v1456
    %1521 = vst [vmem:[#allocation2 + $0x190] sm:$0xff] %v1457
    %1522 = vst [vmem:[#allocation2 + $0x198] sm:$0xff] %v1458
    %1523 = vst [vmem:[#allocation2 + $0x1a0] sm:$0xff] %v1459
    %1524 = vst [vmem:[#allocation2 + $0x1a8] sm:$0xff] %v1460
    %1525 = vst [vmem:[#allocation2 + $0x1b0] sm:$0xff] %v1461
    %1526 = vst [vmem:[#allocation2 + $0x1b8] sm:$0xff] %v1462
    %1527 = vst [vmem:[#allocation2 + $0x1c0] sm:$0xff] %v1463
    %1528 = vst [vmem:[#allocation2 + $0x1c8] sm:$0xff] %v1464
    %1529 = vst [vmem:[#allocation2 + $0x1d0] sm:$0xff] %v1465
    %1530 = vst [vmem:[#allocation2 + $0x1d8] sm:$0xff] %v1466
    %1531 = vst [vmem:[#allocation2 + $0x1e0] sm:$0xff] %v1467
    %1532 = vst [vmem:[#allocation2 + $0x1e8] sm:$0xff] %v1468
    %1533 = vst [vmem:[#allocation2 + $0x1f0] sm:$0xff] %v1469
    %1534 = vst [vmem:[#allocation2 + $0x1f8] sm:$0xff] %v1470
    %v1535 = vld [vmem:[#allocation3] sm:$0xff]
    %v1536 = vld [vmem:[#allocation3 + $0x8] sm:$0xff]
    %v1537 = vld [vmem:[#allocation3 + $0x10] sm:$0xff]
    %v1538 = vld [vmem:[#allocation3 + $0x18] sm:$0xff]
    %v1539 = vld [vmem:[#allocation3 + $0x20] sm:$0xff]
    %v1540 = vld [vmem:[#allocation3 + $0x28] sm:$0xff]
    %v1541 = vld [vmem:[#allocation3 + $0x30] sm:$0xff]
    %v1542 = vld [vmem:[#allocation3 + $0x38] sm:$0xff]
    %v1543 = vld [vmem:[#allocation3 + $0x40] sm:$0xff]
    %v1544 = vld [vmem:[#allocation3 + $0x48] sm:$0xff]
    %v1545 = vld [vmem:[#allocation3 + $0x50] sm:$0xff]
    %v1546 = vld [vmem:[#allocation3 + $0x58] sm:$0xff]
    %v1547 = vld [vmem:[#allocation3 + $0x60] sm:$0xff]
    %v1548 = vld [vmem:[#allocation3 + $0x68] sm:$0xff]
    %v1549 = vld [vmem:[#allocation3 + $0x70] sm:$0xff]
    %v1550 = vld [vmem:[#allocation3 + $0x78] sm:$0xff]
    %v1551 = vld [vmem:[#allocation3 + $0x80] sm:$0xff]
    %v1552 = vld [vmem:[#allocation3 + $0x88] sm:$0xff]
    %v1553 = vld [vmem:[#allocation3 + $0x90] sm:$0xff]
    %v1554 = vld [vmem:[#allocation3 + $0x98] sm:$0xff]
    %v1555 = vld [vmem:[#allocation3 + $0xa0] sm:$0xff]
    %v1556 = vld [vmem:[#allocation3 + $0xa8] sm:$0xff]
    %v1557 = vld [vmem:[#allocation3 + $0xb0] sm:$0xff]
    %v1558 = vld [vmem:[#allocation3 + $0xb8] sm:$0xff]
    %v1559 = vld [vmem:[#allocation3 + $0xc0] sm:$0xff]
    %v1560 = vld [vmem:[#allocation3 + $0xc8] sm:$0xff]
    %v1561 = vld [vmem:[#allocation3 + $0xd0] sm:$0xff]
    %v1562 = vld [vmem:[#allocation3 + $0xd8] sm:$0xff]
    %v1563 = vld [vmem:[#allocation3 + $0xe0] sm:$0xff]
    %v1564 = vld [vmem:[#allocation3 + $0xe8] sm:$0xff]
    %v1565 = vld [vmem:[#allocation3 + $0xf0] sm:$0xff]
    %v1566 = vld [vmem:[#allocation3 + $0xf8] sm:$0xff]
    %v1567 = vld [vmem:[#allocation3 + $0x100] sm:$0xff]
    %v1568 = vld [vmem:[#allocation3 + $0x108] sm:$0xff]
    %v1569 = vld [vmem:[#allocation3 + $0x110] sm:$0xff]
    %v1570 = vld [vmem:[#allocation3 + $0x118] sm:$0xff]
    %v1571 = vld [vmem:[#allocation3 + $0x120] sm:$0xff]
    %v1572 = vld [vmem:[#allocation3 + $0x128] sm:$0xff]
    %v1573 = vld [vmem:[#allocation3 + $0x130] sm:$0xff]
    %v1574 = vld [vmem:[#allocation3 + $0x138] sm:$0xff]
    %v1575 = vld [vmem:[#allocation3 + $0x140] sm:$0xff]
    %v1576 = vld [vmem:[#allocation3 + $0x148] sm:$0xff]
    %v1577 = vld [vmem:[#allocation3 + $0x150] sm:$0xff]
    %v1578 = vld [vmem:[#allocation3 + $0x158] sm:$0xff]
    %v1579 = vld [vmem:[#allocation3 + $0x160] sm:$0xff]
    %v1580 = vld [vmem:[#allocation3 + $0x168] sm:$0xff]
    %v1581 = vld [vmem:[#allocation3 + $0x170] sm:$0xff]
    %v1582 = vld [vmem:[#allocation3 + $0x178] sm:$0xff]
    %v1583 = vld [vmem:[#allocation3 + $0x180] sm:$0xff]
    %v1584 = vld [vmem:[#allocation3 + $0x188] sm:$0xff]
    %v1585 = vld [vmem:[#allocation3 + $0x190] sm:$0xff]
    %v1586 = vld [vmem:[#allocation3 + $0x198] sm:$0xff]
    %v1587 = vld [vmem:[#allocation3 + $0x1a0] sm:$0xff]
    %v1588 = vld [vmem:[#allocation3 + $0x1a8] sm:$0xff]
    %v1589 = vld [vmem:[#allocation3 + $0x1b0] sm:$0xff]
    %v1590 = vld [vmem:[#allocation3 + $0x1b8] sm:$0xff]
    %v1591 = vld [vmem:[#allocation3 + $0x1c0] sm:$0xff]
    %v1592 = vld [vmem:[#allocation3 + $0x1c8] sm:$0xff]
    %v1593 = vld [vmem:[#allocation3 + $0x1d0] sm:$0xff]
    %v1594 = vld [vmem:[#allocation3 + $0x1d8] sm:$0xff]
    %v1595 = vld [vmem:[#allocation3 + $0x1e0] sm:$0xff]
    %v1596 = vld [vmem:[#allocation3 + $0x1e8] sm:$0xff]
    %v1597 = vld [vmem:[#allocation3 + $0x1f0] sm:$0xff]
    %v1598 = vld [vmem:[#allocation3 + $0x1f8] sm:$0xff]
    %v1599 = vsel %vm1215, 1e+30, %v1005
    %v1600 = vsel %vm1216, 1e+30, %v1006
    %v1601 = vsel %vm1217, 1e+30, %v1007
    %v1602 = vsel %vm1218, 1e+30, %v1008
    %v1603 = vsel %vm1219, 1e+30, %v1009
    %v1604 = vsel %vm1220, 1e+30, %v1010
    %v1605 = vsel %vm1221, 1e+30, %v1011
    %v1606 = vsel %vm1222, 1e+30, %v1012
    %v1607 = vsel %vm1223, 1e+30, %v1013
    %v1608 = vsel %vm1224, 1e+30, %v1014
    %v1609 = vsel %vm1225, 1e+30, %v1015
    %v1610 = vsel %vm1226, 1e+30, %v1016
    %v1611 = vsel %vm1227, 1e+30, %v1017
    %v1612 = vsel %vm1228, 1e+30, %v1018
    %v1613 = vsel %vm1229, 1e+30, %v1019
    %v1614 = vsel %vm1230, 1e+30, %v1020
    %v1615 = vsel %vm1231, 1e+30, %v1021
    %v1616 = vsel %vm1232, 1e+30, %v1022
    %v1617 = vsel %vm1233, 1e+30, %v1023
    %v1618 = vsel %vm1234, 1e+30, %v1024
    %v1619 = vsel %vm1235, 1e+30, %v1025
    %v1620 = vsel %vm1236, 1e+30, %v1026
    %v1621 = vsel %vm1237, 1e+30, %v1027
    %v1622 = vsel %vm1238, 1e+30, %v1028
    %v1623 = vsel %vm1239, 1e+30, %v1029
    %v1624 = vsel %vm1240, 1e+30, %v1030
    %v1625 = vsel %vm1241, 1e+30, %v1031
    %v1626 = vsel %vm1242, 1e+30, %v1032
    %v1627 = vsel %vm1243, 1e+30, %v1033
    %v1628 = vsel %vm1244, 1e+30, %v1034
    %v1629 = vsel %vm1245, 1e+30, %v1035
    %v1630 = vsel %vm1246, 1e+30, %v1036
    %v1631 = vsel %vm1247, 1e+30, %v1037
    %v1632 = vsel %vm1248, 1e+30, %v1038
    %v1633 = vsel %vm1249, 1e+30, %v1039
    %v1634 = vsel %vm1250, 1e+30, %v1040
    %v1635 = vsel %vm1251, 1e+30, %v1041
    %v1636 = vsel %vm1252, 1e+30, %v1042
    %v1637 = vsel %vm1253, 1e+30, %v1043
    %v1638 = vsel %vm1254, 1e+30, %v1044
    %v1639 = vsel %vm1255, 1e+30, %v1045
    %v1640 = vsel %vm1256, 1e+30, %v1046
    %v1641 = vsel %vm1257, 1e+30, %v1047
    %v1642 = vsel %vm1258, 1e+30, %v1048
    %v1643 = vsel %vm1259, 1e+30, %v1049
    %v1644 = vsel %vm1260, 1e+30, %v1050
    %v1645 = vsel %vm1261, 1e+30, %v1051
    %v1646 = vsel %vm1262, 1e+30, %v1052
    %v1647 = vsel %vm1263, 1e+30, %v1053
    %v1648 = vsel %vm1264, 1e+30, %v1054
    %v1649 = vsel %vm1265, 1e+30, %v1055
    %v1650 = vsel %vm1266, 1e+30, %v1056
    %v1651 = vsel %vm1267, 1e+30, %v1057
    %v1652 = vsel %vm1268, 1e+30, %v1058
    %v1653 = vsel %vm1269, 1e+30, %v1059
    %v1654 = vsel %vm1270, 1e+30, %v1060
    %v1655 = vsel %vm1271, 1e+30, %v1061
    %v1656 = vsel %vm1272, 1e+30, %v1062
    %v1657 = vsel %vm1273, 1e+30, %v1063
    %v1658 = vsel %vm1274, 1e+30, %v1064
    %v1659 = vsel %vm1275, 1e+30, %v1065
    %v1660 = vsel %vm1276, 1e+30, %v1066
    %v1661 = vsel %vm1277, 1e+30, %v1067
    %v1662 = vsel %vm1278, 1e+30, %v1068
    %v1663 = vmin.f32 %v1535, %v1599
    %v1664 = vmin.f32 %v1536, %v1600
    %v1665 = vmin.f32 %v1537, %v1601
    %v1666 = vmin.f32 %v1538, %v1602
    %v1667 = vmin.f32 %v1539, %v1603
    %v1668 = vmin.f32 %v1540, %v1604
    %v1669 = vmin.f32 %v1541, %v1605
    %v1670 = vmin.f32 %v1542, %v1606
    %v1671 = vmin.f32 %v1543, %v1607
    %v1672 = vmin.f32 %v1544, %v1608
    %v1673 = vmin.f32 %v1545, %v1609
    %v1674 = vmin.f32 %v1546, %v1610
    %v1675 = vmin.f32 %v1547, %v1611
    %v1676 = vmin.f32 %v1548, %v1612
    %v1677 = vmin.f32 %v1549, %v1613
    %v1678 = vmin.f32 %v1550, %v1614
    %v1679 = vmin.f32 %v1551, %v1615
    %v1680 = vmin.f32 %v1552, %v1616
    %v1681 = vmin.f32 %v1553, %v1617
    %v1682 = vmin.f32 %v1554, %v1618
    %v1683 = vmin.f32 %v1555, %v1619
    %v1684 = vmin.f32 %v1556, %v1620
    %v1685 = vmin.f32 %v1557, %v1621
    %v1686 = vmin.f32 %v1558, %v1622
    %v1687 = vmin.f32 %v1559, %v1623
    %v1688 = vmin.f32 %v1560, %v1624
    %v1689 = vmin.f32 %v1561, %v1625
    %v1690 = vmin.f32 %v1562, %v1626
    %v1691 = vmin.f32 %v1563, %v1627
    %v1692 = vmin.f32 %v1564, %v1628
    %v1693 = vmin.f32 %v1565, %v1629
    %v1694 = vmin.f32 %v1566, %v1630
    %v1695 = vmin.f32 %v1567, %v1631
    %v1696 = vmin.f32 %v1568, %v1632
    %v1697 = vmin.f32 %v1569, %v1633
    %v1698 = vmin.f32 %v1570, %v1634
    %v1699 = vmin.f32 %v1571, %v1635
    %v1700 = vmin.f32 %v1572, %v1636
    %v1701 = vmin.f32 %v1573, %v1637
    %v1702 = vmin.f32 %v1574, %v1638
    %v1703 = vmin.f32 %v1575, %v1639
    %v1704 = vmin.f32 %v1576, %v1640
    %v1705 = vmin.f32 %v1577, %v1641
    %v1706 = vmin.f32 %v1578, %v1642
    %v1707 = vmin.f32 %v1579, %v1643
    %v1708 = vmin.f32 %v1580, %v1644
    %v1709 = vmin.f32 %v1581, %v1645
    %v1710 = vmin.f32 %v1582, %v1646
    %v1711 = vmin.f32 %v1583, %v1647
    %v1712 = vmin.f32 %v1584, %v1648
    %v1713 = vmin.f32 %v1585, %v1649
    %v1714 = vmin.f32 %v1586, %v1650
    %v1715 = vmin.f32 %v1587, %v1651
    %v1716 = vmin.f32 %v1588, %v1652
    %v1717 = vmin.f32 %v1589, %v1653
    %v1718 = vmin.f32 %v1590, %v1654
    %v1719 = vmin.f32 %v1591, %v1655
    %v1720 = vmin.f32 %v1592, %v1656
    %v1721 = vmin.f32 %v1593, %v1657
    %v1722 = vmin.f32 %v1594, %v1658
    %v1723 = vmin.f32 %v1595, %v1659
    %v1724 = vmin.f32 %v1596, %v1660
    %v1725 = vmin.f32 %v1597, %v1661
    %v1726 = vmin.f32 %v1598, %v1662
    %1727 = vst [vmem:[#allocation3] sm:$0xff] %v1663
    %1728 = vst [vmem:[#allocation3 + $0x8] sm:$0xff] %v1664
    %1729 = vst [vmem:[#allocation3 + $0x10] sm:$0xff] %v1665
    %1730 = vst [vmem:[#allocation3 + $0x18] sm:$0xff] %v1666
    %1731 = vst [vmem:[#allocation3 + $0x20] sm:$0xff] %v1667
    %1732 = vst [vmem:[#allocation3 + $0x28] sm:$0xff] %v1668
    %1733 = vst [vmem:[#allocation3 + $0x30] sm:$0xff] %v1669
    %1734 = vst [vmem:[#allocation3 + $0x38] sm:$0xff] %v1670
    %1735 = vst [vmem:[#allocation3 + $0x40] sm:$0xff] %v1671
    %1736 = vst [vmem:[#allocation3 + $0x48] sm:$0xff] %v1672
    %1737 = vst [vmem:[#allocation3 + $0x50] sm:$0xff] %v1673
    %1738 = vst [vmem:[#allocation3 + $0x58] sm:$0xff] %v1674
    %1739 = vst [vmem:[#allocation3 + $0x60] sm:$0xff] %v1675
    %1740 = vst [vmem:[#allocation3 + $0x68] sm:$0xff] %v1676
    %1741 = vst [vmem:[#allocation3 + $0x70] sm:$0xff] %v1677
    %1742 = vst [vmem:[#allocation3 + $0x78] sm:$0xff] %v1678
    %1743 = vst [vmem:[#allocation3 + $0x80] sm:$0xff] %v1679
    %1744 = vst [vmem:[#allocation3 + $0x88] sm:$0xff] %v1680
    %1745 = vst [vmem:[#allocation3 + $0x90] sm:$0xff] %v1681
    %1746 = vst [vmem:[#allocation3 + $0x98] sm:$0xff] %v1682
    %1747 = vst [vmem:[#allocation3 + $0xa0] sm:$0xff] %v1683
    %1748 = vst [vmem:[#allocation3 + $0xa8] sm:$0xff] %v1684
    %1749 = vst [vmem:[#allocation3 + $0xb0] sm:$0xff] %v1685
    %1750 = vst [vmem:[#allocation3 + $0xb8] sm:$0xff] %v1686
    %1751 = vst [vmem:[#allocation3 + $0xc0] sm:$0xff] %v1687
    %1752 = vst [vmem:[#allocation3 + $0xc8] sm:$0xff] %v1688
    %1753 = vst [vmem:[#allocation3 + $0xd0] sm:$0xff] %v1689
    %1754 = vst [vmem:[#allocation3 + $0xd8] sm:$0xff] %v1690
    %1755 = vst [vmem:[#allocation3 + $0xe0] sm:$0xff] %v1691
    %1756 = vst [vmem:[#allocation3 + $0xe8] sm:$0xff] %v1692
    %1757 = vst [vmem:[#allocation3 + $0xf0] sm:$0xff] %v1693
    %1758 = vst [vmem:[#allocation3 + $0xf8] sm:$0xff] %v1694
    %1759 = vst [vmem:[#allocation3 + $0x100] sm:$0xff] %v1695
    %1760 = vst [vmem:[#allocation3 + $0x108] sm:$0xff] %v1696
    %1761 = vst [vmem:[#allocation3 + $0x110] sm:$0xff] %v1697
    %1762 = vst [vmem:[#allocation3 + $0x118] sm:$0xff] %v1698
    %1763 = vst [vmem:[#allocation3 + $0x120] sm:$0xff] %v1699
    %1764 = vst [vmem:[#allocation3 + $0x128] sm:$0xff] %v1700
    %1765 = vst [vmem:[#allocation3 + $0x130] sm:$0xff] %v1701
    %1766 = vst [vmem:[#allocation3 + $0x138] sm:$0xff] %v1702
    %1767 = vst [vmem:[#allocation3 + $0x140] sm:$0xff] %v1703
    %1768 = vst [vmem:[#allocation3 + $0x148] sm:$0xff] %v1704
    %1769 = vst [vmem:[#allocation3 + $0x150] sm:$0xff] %v1705
    %1770 = vst [vmem:[#allocation3 + $0x158] sm:$0xff] %v1706
    %1771 = vst [vmem:[#allocation3 + $0x160] sm:$0xff] %v1707
    %1772 = vst [vmem:[#allocation3 + $0x168] sm:$0xff] %v1708
    %1773 = vst [vmem:[#allocation3 + $0x170] sm:$0xff] %v1709
    %1774 = vst [vmem:[#allocation3 + $0x178] sm:$0xff] %v1710
    %1775 = vst [vmem:[#allocation3 + $0x180] sm:$0xff] %v1711
    %1776 = vst [vmem:[#allocation3 + $0x188] sm:$0xff] %v1712
    %1777 = vst [vmem:[#allocation3 + $0x190] sm:$0xff] %v1713
    %1778 = vst [vmem:[#allocation3 + $0x198] sm:$0xff] %v1714
    %1779 = vst [vmem:[#allocation3 + $0x1a0] sm:$0xff] %v1715
    %1780 = vst [vmem:[#allocation3 + $0x1a8] sm:$0xff] %v1716
    %1781 = vst [vmem:[#allocation3 + $0x1b0] sm:$0xff] %v1717
    %1782 = vst [vmem:[#allocation3 + $0x1b8] sm:$0xff] %v1718
    %1783 = vst [vmem:[#allocation3 + $0x1c0] sm:$0xff] %v1719
    %1784 = vst [vmem:[#allocation3 + $0x1c8] sm:$0xff] %v1720
    %1785 = vst [vmem:[#allocation3 + $0x1d0] sm:$0xff] %v1721
    %1786 = vst [vmem:[#allocation3 + $0x1d8] sm:$0xff] %v1722
    %1787 = vst [vmem:[#allocation3 + $0x1e0] sm:$0xff] %v1723
    %1788 = vst [vmem:[#allocation3 + $0x1e8] sm:$0xff] %v1724
    %1789 = vst [vmem:[#allocation3 + $0x1f0] sm:$0xff] %v1725
    %1790 = vst [vmem:[#allocation3 + $0x1f8] sm:$0xff] %v1726
    // Predicated region
    $region22: #{tpu_custom_call.1} parent=1 // pred_check
      %p1791 = pneg %p19
    $region23: #{tpu_custom_call.1} parent=1 // pred_check_branch
      %1793 = sbr.rel (%p1791) target = $region25
    $region24: #{tpu_custom_call.1} parent=1 // pred_region
      %v1794 = vld [vmem:[#allocation2] sm:$0xff]
      %v1795 = vld [vmem:[#allocation2 + $0x8] sm:$0xff]
      %v1796 = vld [vmem:[#allocation2 + $0x10] sm:$0xff]
      %v1797 = vld [vmem:[#allocation2 + $0x18] sm:$0xff]
      %v1798 = vld [vmem:[#allocation2 + $0x20] sm:$0xff]
      %v1799 = vld [vmem:[#allocation2 + $0x28] sm:$0xff]
      %v1800 = vld [vmem:[#allocation2 + $0x30] sm:$0xff]
      %v1801 = vld [vmem:[#allocation2 + $0x38] sm:$0xff]
      %v1802 = vld [vmem:[#allocation2 + $0x40] sm:$0xff]
      %v1803 = vld [vmem:[#allocation2 + $0x48] sm:$0xff]
      %v1804 = vld [vmem:[#allocation2 + $0x50] sm:$0xff]
      %v1805 = vld [vmem:[#allocation2 + $0x58] sm:$0xff]
      %v1806 = vld [vmem:[#allocation2 + $0x60] sm:$0xff]
      %v1807 = vld [vmem:[#allocation2 + $0x68] sm:$0xff]
      %v1808 = vld [vmem:[#allocation2 + $0x70] sm:$0xff]
      %v1809 = vld [vmem:[#allocation2 + $0x78] sm:$0xff]
      %v1810 = vld [vmem:[#allocation2 + $0x80] sm:$0xff]
      %v1811 = vld [vmem:[#allocation2 + $0x88] sm:$0xff]
      %v1812 = vld [vmem:[#allocation2 + $0x90] sm:$0xff]
      %v1813 = vld [vmem:[#allocation2 + $0x98] sm:$0xff]
      %v1814 = vld [vmem:[#allocation2 + $0xa0] sm:$0xff]
      %v1815 = vld [vmem:[#allocation2 + $0xa8] sm:$0xff]
      %v1816 = vld [vmem:[#allocation2 + $0xb0] sm:$0xff]
      %v1817 = vld [vmem:[#allocation2 + $0xb8] sm:$0xff]
      %v1818 = vld [vmem:[#allocation2 + $0xc0] sm:$0xff]
      %v1819 = vld [vmem:[#allocation2 + $0xc8] sm:$0xff]
      %v1820 = vld [vmem:[#allocation2 + $0xd0] sm:$0xff]
      %v1821 = vld [vmem:[#allocation2 + $0xd8] sm:$0xff]
      %v1822 = vld [vmem:[#allocation2 + $0xe0] sm:$0xff]
      %v1823 = vld [vmem:[#allocation2 + $0xe8] sm:$0xff]
      %v1824 = vld [vmem:[#allocation2 + $0xf0] sm:$0xff]
      %v1825 = vld [vmem:[#allocation2 + $0xf8] sm:$0xff]
      %v1826 = vld [vmem:[#allocation2 + $0x100] sm:$0xff]
      %v1827 = vld [vmem:[#allocation2 + $0x108] sm:$0xff]
      %v1828 = vld [vmem:[#allocation2 + $0x110] sm:$0xff]
      %v1829 = vld [vmem:[#allocation2 + $0x118] sm:$0xff]
      %v1830 = vld [vmem:[#allocation2 + $0x120] sm:$0xff]
      %v1831 = vld [vmem:[#allocation2 + $0x128] sm:$0xff]
      %v1832 = vld [vmem:[#allocation2 + $0x130] sm:$0xff]
      %v1833 = vld [vmem:[#allocation2 + $0x138] sm:$0xff]
      %v1834 = vld [vmem:[#allocation2 + $0x140] sm:$0xff]
      %v1835 = vld [vmem:[#allocation2 + $0x148] sm:$0xff]
      %v1836 = vld [vmem:[#allocation2 + $0x150] sm:$0xff]
      %v1837 = vld [vmem:[#allocation2 + $0x158] sm:$0xff]
      %v1838 = vld [vmem:[#allocation2 + $0x160] sm:$0xff]
      %v1839 = vld [vmem:[#allocation2 + $0x168] sm:$0xff]
      %v1840 = vld [vmem:[#allocation2 + $0x170] sm:$0xff]
      %v1841 = vld [vmem:[#allocation2 + $0x178] sm:$0xff]
      %v1842 = vld [vmem:[#allocation2 + $0x180] sm:$0xff]
      %v1843 = vld [vmem:[#allocation2 + $0x188] sm:$0xff]
      %v1844 = vld [vmem:[#allocation2 + $0x190] sm:$0xff]
      %v1845 = vld [vmem:[#allocation2 + $0x198] sm:$0xff]
      %v1846 = vld [vmem:[#allocation2 + $0x1a0] sm:$0xff]
      %v1847 = vld [vmem:[#allocation2 + $0x1a8] sm:$0xff]
      %v1848 = vld [vmem:[#allocation2 + $0x1b0] sm:$0xff]
      %v1849 = vld [vmem:[#allocation2 + $0x1b8] sm:$0xff]
      %v1850 = vld [vmem:[#allocation2 + $0x1c0] sm:$0xff]
      %v1851 = vld [vmem:[#allocation2 + $0x1c8] sm:$0xff]
      %v1852 = vld [vmem:[#allocation2 + $0x1d0] sm:$0xff]
      %v1853 = vld [vmem:[#allocation2 + $0x1d8] sm:$0xff]
      %v1854 = vld [vmem:[#allocation2 + $0x1e0] sm:$0xff]
      %v1855 = vld [vmem:[#allocation2 + $0x1e8] sm:$0xff]
      %v1856 = vld [vmem:[#allocation2 + $0x1f0] sm:$0xff]
      %v1857 = vld [vmem:[#allocation2 + $0x1f8] sm:$0xff]
      %v1858 = vmax.f32 %v1794, %v1798
      %v1859 = vmax.f32 %v1796, %v1800
      %v1860 = vmax.f32 %v1858, %v1802
      %v1861 = vmax.f32 %v1859, %v1804
      %v1862 = vmax.f32 %v1860, %v1806
      %v1863 = vmax.f32 %v1861, %v1808
      %v1864 = vmax.f32 %v1862, %v1810
      %v1865 = vmax.f32 %v1863, %v1812
      %v1866 = vmax.f32 %v1864, %v1814
      %v1867 = vmax.f32 %v1865, %v1816
      %v1868 = vmax.f32 %v1866, %v1818
      %v1869 = vmax.f32 %v1867, %v1820
      %v1870 = vmax.f32 %v1868, %v1822
      %v1871 = vmax.f32 %v1869, %v1824
      %v1872 = vmax.f32 %v1870, %v1826
      %v1873 = vmax.f32 %v1871, %v1828
      %v1874 = vmax.f32 %v1872, %v1830
      %v1875 = vmax.f32 %v1873, %v1832
      %v1876 = vmax.f32 %v1874, %v1834
      %v1877 = vmax.f32 %v1875, %v1836
      %v1878 = vmax.f32 %v1876, %v1838
      %v1879 = vmax.f32 %v1877, %v1840
      %v1880 = vmax.f32 %v1878, %v1842
      %v1881 = vmax.f32 %v1879, %v1844
      %v1882 = vmax.f32 %v1880, %v1846
      %v1883 = vmax.f32 %v1881, %v1848
      %v1884 = vmax.f32 %v1882, %v1850
      %v1885 = vmax.f32 %v1883, %v1852
      %v1886 = vmax.f32 %v1884, %v1854
      %v1887 = vmax.f32 %v1885, %v1856
      %v1888 = vmax.f32 %v1886, %v1887
      %v1889 = vrot.slane %v1888, 4
      %v1890 = vmax.f32 %v1888, %v1889
      %v1891 = vrot.slane %v1890, 2
      %v1892 = vmax.f32 %v1890, %v1891
      %v1893 = vrot.slane %v1892, 1
      %v1894 = vmax.f32 %v1892, %v1893
      %v1895 = vmax.f32 %v1795, %v1799
      %v1896 = vmax.f32 %v1797, %v1801
      %v1897 = vmax.f32 %v1895, %v1803
      %v1898 = vmax.f32 %v1896, %v1805
      %v1899 = vmax.f32 %v1897, %v1807
      %v1900 = vmax.f32 %v1898, %v1809
      %v1901 = vmax.f32 %v1899, %v1811
      %v1902 = vmax.f32 %v1900, %v1813
      %v1903 = vmax.f32 %v1901, %v1815
      %v1904 = vmax.f32 %v1902, %v1817
      %v1905 = vmax.f32 %v1903, %v1819
      %v1906 = vmax.f32 %v1904, %v1821
      %v1907 = vmax.f32 %v1905, %v1823
      %v1908 = vmax.f32 %v1906, %v1825
      %v1909 = vmax.f32 %v1907, %v1827
      %v1910 = vmax.f32 %v1908, %v1829
      %v1911 = vmax.f32 %v1909, %v1831
      %v1912 = vmax.f32 %v1910, %v1833
      %v1913 = vmax.f32 %v1911, %v1835
      %v1914 = vmax.f32 %v1912, %v1837
      %v1915 = vmax.f32 %v1913, %v1839
      %v1916 = vmax.f32 %v1914, %v1841
      %v1917 = vmax.f32 %v1915, %v1843
      %v1918 = vmax.f32 %v1916, %v1845
      %v1919 = vmax.f32 %v1917, %v1847
      %v1920 = vmax.f32 %v1918, %v1849
      %v1921 = vmax.f32 %v1919, %v1851
      %v1922 = vmax.f32 %v1920, %v1853
      %v1923 = vmax.f32 %v1921, %v1855
      %v1924 = vmax.f32 %v1922, %v1857
      %v1925 = vmax.f32 %v1923, %v1924
      %v1926 = vrot.slane %v1925, 4
      %v1927 = vmax.f32 %v1925, %v1926
      %v1928 = vrot.slane %v1927, 2
      %v1929 = vmax.f32 %v1927, %v1928
      %v1930 = vrot.slane %v1929, 1
      %v1931 = vmax.f32 %v1929, %v1930
      %v1932 = vld [vmem:[#allocation3] sm:$0xff]
      %v1933 = vld [vmem:[#allocation3 + $0x8] sm:$0xff]
      %v1934 = vld [vmem:[#allocation3 + $0x10] sm:$0xff]
      %v1935 = vld [vmem:[#allocation3 + $0x18] sm:$0xff]
      %v1936 = vld [vmem:[#allocation3 + $0x20] sm:$0xff]
      %v1937 = vld [vmem:[#allocation3 + $0x28] sm:$0xff]
      %v1938 = vld [vmem:[#allocation3 + $0x30] sm:$0xff]
      %v1939 = vld [vmem:[#allocation3 + $0x38] sm:$0xff]
      %v1940 = vld [vmem:[#allocation3 + $0x40] sm:$0xff]
      %v1941 = vld [vmem:[#allocation3 + $0x48] sm:$0xff]
      %v1942 = vld [vmem:[#allocation3 + $0x50] sm:$0xff]
      %v1943 = vld [vmem:[#allocation3 + $0x58] sm:$0xff]
      %v1944 = vld [vmem:[#allocation3 + $0x60] sm:$0xff]
      %v1945 = vld [vmem:[#allocation3 + $0x68] sm:$0xff]
      %v1946 = vld [vmem:[#allocation3 + $0x70] sm:$0xff]
      %v1947 = vld [vmem:[#allocation3 + $0x78] sm:$0xff]
      %v1948 = vld [vmem:[#allocation3 + $0x80] sm:$0xff]
      %v1949 = vld [vmem:[#allocation3 + $0x88] sm:$0xff]
      %v1950 = vld [vmem:[#allocation3 + $0x90] sm:$0xff]
      %v1951 = vld [vmem:[#allocation3 + $0x98] sm:$0xff]
      %v1952 = vld [vmem:[#allocation3 + $0xa0] sm:$0xff]
      %v1953 = vld [vmem:[#allocation3 + $0xa8] sm:$0xff]
      %v1954 = vld [vmem:[#allocation3 + $0xb0] sm:$0xff]
      %v1955 = vld [vmem:[#allocation3 + $0xb8] sm:$0xff]
      %v1956 = vld [vmem:[#allocation3 + $0xc0] sm:$0xff]
      %v1957 = vld [vmem:[#allocation3 + $0xc8] sm:$0xff]
      %v1958 = vld [vmem:[#allocation3 + $0xd0] sm:$0xff]
      %v1959 = vld [vmem:[#allocation3 + $0xd8] sm:$0xff]
      %v1960 = vld [vmem:[#allocation3 + $0xe0] sm:$0xff]
      %v1961 = vld [vmem:[#allocation3 + $0xe8] sm:$0xff]
      %v1962 = vld [vmem:[#allocation3 + $0xf0] sm:$0xff]
      %v1963 = vld [vmem:[#allocation3 + $0xf8] sm:$0xff]
      %v1964 = vld [vmem:[#allocation3 + $0x100] sm:$0xff]
      %v1965 = vld [vmem:[#allocation3 + $0x108] sm:$0xff]
      %v1966 = vld [vmem:[#allocation3 + $0x110] sm:$0xff]
      %v1967 = vld [vmem:[#allocation3 + $0x118] sm:$0xff]
      %v1968 = vld [vmem:[#allocation3 + $0x120] sm:$0xff]
      %v1969 = vld [vmem:[#allocation3 + $0x128] sm:$0xff]
      %v1970 = vld [vmem:[#allocation3 + $0x130] sm:$0xff]
      %v1971 = vld [vmem:[#allocation3 + $0x138] sm:$0xff]
      %v1972 = vld [vmem:[#allocation3 + $0x140] sm:$0xff]
      %v1973 = vld [vmem:[#allocation3 + $0x148] sm:$0xff]
      %v1974 = vld [vmem:[#allocation3 + $0x150] sm:$0xff]
      %v1975 = vld [vmem:[#allocation3 + $0x158] sm:$0xff]
      %v1976 = vld [vmem:[#allocation3 + $0x160] sm:$0xff]
      %v1977 = vld [vmem:[#allocation3 + $0x168] sm:$0xff]
      %v1978 = vld [vmem:[#allocation3 + $0x170] sm:$0xff]
      %v1979 = vld [vmem:[#allocation3 + $0x178] sm:$0xff]
      %v1980 = vld [vmem:[#allocation3 + $0x180] sm:$0xff]
      %v1981 = vld [vmem:[#allocation3 + $0x188] sm:$0xff]
      %v1982 = vld [vmem:[#allocation3 + $0x190] sm:$0xff]
      %v1983 = vld [vmem:[#allocation3 + $0x198] sm:$0xff]
      %v1984 = vld [vmem:[#allocation3 + $0x1a0] sm:$0xff]
      %v1985 = vld [vmem:[#allocation3 + $0x1a8] sm:$0xff]
      %v1986 = vld [vmem:[#allocation3 + $0x1b0] sm:$0xff]
      %v1987 = vld [vmem:[#allocation3 + $0x1b8] sm:$0xff]
      %v1988 = vld [vmem:[#allocation3 + $0x1c0] sm:$0xff]
      %v1989 = vld [vmem:[#allocation3 + $0x1c8] sm:$0xff]
      %v1990 = vld [vmem:[#allocation3 + $0x1d0] sm:$0xff]
      %v1991 = vld [vmem:[#allocation3 + $0x1d8] sm:$0xff]
      %v1992 = vld [vmem:[#allocation3 + $0x1e0] sm:$0xff]
      %v1993 = vld [vmem:[#allocation3 + $0x1e8] sm:$0xff]
      %v1994 = vld [vmem:[#allocation3 + $0x1f0] sm:$0xff]
      %v1995 = vld [vmem:[#allocation3 + $0x1f8] sm:$0xff]
      %v1996 = vmin.f32 %v1932, %v1936
      %v1997 = vmin.f32 %v1934, %v1938
      %v1998 = vmin.f32 %v1996, %v1940
      %v1999 = vmin.f32 %v1997, %v1942
      %v2000 = vmin.f32 %v1998, %v1944
      %v2001 = vmin.f32 %v1999, %v1946
      %v2002 = vmin.f32 %v2000, %v1948
      %v2003 = vmin.f32 %v2001, %v1950
      %v2004 = vmin.f32 %v2002, %v1952
      %v2005 = vmin.f32 %v2003, %v1954
      %v2006 = vmin.f32 %v2004, %v1956
      %v2007 = vmin.f32 %v2005, %v1958
      %v2008 = vmin.f32 %v2006, %v1960
      %v2009 = vmin.f32 %v2007, %v1962
      %v2010 = vmin.f32 %v2008, %v1964
      %v2011 = vmin.f32 %v2009, %v1966
      %v2012 = vmin.f32 %v2010, %v1968
      %v2013 = vmin.f32 %v2011, %v1970
      %v2014 = vmin.f32 %v2012, %v1972
      %v2015 = vmin.f32 %v2013, %v1974
      %v2016 = vmin.f32 %v2014, %v1976
      %v2017 = vmin.f32 %v2015, %v1978
      %v2018 = vmin.f32 %v2016, %v1980
      %v2019 = vmin.f32 %v2017, %v1982
      %v2020 = vmin.f32 %v2018, %v1984
      %v2021 = vmin.f32 %v2019, %v1986
      %v2022 = vmin.f32 %v2020, %v1988
      %v2023 = vmin.f32 %v2021, %v1990
      %v2024 = vmin.f32 %v2022, %v1992
      %v2025 = vmin.f32 %v2023, %v1994
      %v2026 = vmin.f32 %v2024, %v2025
      %v2027 = vrot.slane %v2026, 4
      %v2028 = vmin.f32 %v2026, %v2027
      %v2029 = vrot.slane %v2028, 2
      %v2030 = vmin.f32 %v2028, %v2029
      %v2031 = vrot.slane %v2030, 1
      %v2032 = vmin.f32 %v2030, %v2031
      %v2033 = vmin.f32 %v1933, %v1937
      %v2034 = vmin.f32 %v1935, %v1939
      %v2035 = vmin.f32 %v2033, %v1941
      %v2036 = vmin.f32 %v2034, %v1943
      %v2037 = vmin.f32 %v2035, %v1945
      %v2038 = vmin.f32 %v2036, %v1947
      %v2039 = vmin.f32 %v2037, %v1949
      %v2040 = vmin.f32 %v2038, %v1951
      %v2041 = vmin.f32 %v2039, %v1953
      %v2042 = vmin.f32 %v2040, %v1955
      %v2043 = vmin.f32 %v2041, %v1957
      %v2044 = vmin.f32 %v2042, %v1959
      %v2045 = vmin.f32 %v2043, %v1961
      %v2046 = vmin.f32 %v2044, %v1963
      %v2047 = vmin.f32 %v2045, %v1965
      %v2048 = vmin.f32 %v2046, %v1967
      %v2049 = vmin.f32 %v2047, %v1969
      %v2050 = vmin.f32 %v2048, %v1971
      %v2051 = vmin.f32 %v2049, %v1973
      %v2052 = vmin.f32 %v2050, %v1975
      %v2053 = vmin.f32 %v2051, %v1977
      %v2054 = vmin.f32 %v2052, %v1979
      %v2055 = vmin.f32 %v2053, %v1981
      %v2056 = vmin.f32 %v2054, %v1983
      %v2057 = vmin.f32 %v2055, %v1985
      %v2058 = vmin.f32 %v2056, %v1987
      %v2059 = vmin.f32 %v2057, %v1989
      %v2060 = vmin.f32 %v2058, %v1991
      %v2061 = vmin.f32 %v2059, %v1993
      %v2062 = vmin.f32 %v2060, %v1995
      %v2063 = vmin.f32 %v2061, %v2062
      %v2064 = vrot.slane %v2063, 4
      %v2065 = vmin.f32 %v2063, %v2064
      %v2066 = vrot.slane %v2065, 2
      %v2067 = vmin.f32 %v2065, %v2066
      %v2068 = vrot.slane %v2067, 1
      %v2069 = vmin.f32 %v2067, %v2068
      %v2070 = vmax.f32 %v1894, 1e-12
      %v2071 = vmax.f32 %v1931, 1e-12
      %v2072 = vrsqrt.pop %v2070
      %v2073 = vmul.f32 %v2070, %v2072
      %vm2074 = vcmp.eq.f32.partialorder %v2070, inf
      %v2075 = vsel %vm2074, %v2070, %v2073
      %vm2076 = vcmp.eq.f32.partialorder %v2070, 0.0
      %v2077 = vand.u32 %v2070, 2147483648
      %v2078 = vsel %vm2076, %v2077, %v2075
      %v2079 = vrsqrt.pop %v2071
      %v2080 = vmul.f32 %v2071, %v2079
      %vm2081 = vcmp.eq.f32.partialorder %v2071, inf
      %v2082 = vsel %vm2081, %v2071, %v2080
      %vm2083 = vcmp.eq.f32.partialorder %v2071, 0.0
      %v2084 = vand.u32 %v2071, 2147483648
      %v2085 = vsel %vm2083, %v2084, %v2082
      %v2086 = vmax.f32 %v2032, 1e-12
      %v2087 = vmax.f32 %v2069, 1e-12
      %v2088 = vrsqrt.pop %v2086
      %v2089 = vmul.f32 %v2086, %v2088
      %vm2090 = vcmp.eq.f32.partialorder %v2086, inf
      %v2091 = vsel %vm2090, %v2086, %v2089
      %vm2092 = vcmp.eq.f32.partialorder %v2086, 0.0
      %v2093 = vand.u32 %v2086, 2147483648
      %v2094 = vsel %vm2092, %v2093, %v2091
      %v2095 = vrsqrt.pop %v2087
      %v2096 = vmul.f32 %v2087, %v2095
      %vm2097 = vcmp.eq.f32.partialorder %v2087, inf
      %v2098 = vsel %vm2097, %v2087, %v2096
      %vm2099 = vcmp.eq.f32.partialorder %v2087, 0.0
      %v2100 = vand.u32 %v2087, 2147483648
      %v2101 = vsel %vm2099, %v2100, %v2098
      %v2102 = vsub.f32 %v2078, %v2094
      %v2103 = vsub.f32 %v2085, %v2101
      %v2104 = vadd.f32 %v2102, 0.3
      %v2105 = vadd.f32 %v2103, 0.3
      %v2106 = vmax.f32 %v2104, 0.0
      %v2107 = vmax.f32 %v2105, 0.0
      %v2110 = vcombine.low %v2106, %v2107
      %v2112 = vunpack.c.l.s4 1966171168
      %v2113 = vunpack.c.0.s8 %v2112
      %v2114 = vlaneseq
      %v2115 = vshrl.u32 %v2114, 7
      %v2116 = vsub.s32 %v2113, %v2115
      %v2117 = vrot.slane %v2110, %v2116
      %v2119 = vunpack.c.l.s4 1966171168
      %v2120 = vunpack.c.0.s8 %v2119
      %v2121 = vlaneseq
      %v2122 = vshrl.u32 %v2121, 7
      %v2123 = vsub.s32 %v2120, %v2122
      %v2124 = vrot.slane %v2117, %v2123
      %v2126 = vlaneseq
      %vm2127 = vcmp.ge.s32.totalorder %v2126, 0
      %vm2128 = vcmp.lt.s32.totalorder %v2126, 256
      %vm2129 = vmand %vm2127, %vm2128
      %2130 = vst.msk [vmem:[#allocation4] sm:$0x3] %vm2129, %v2124
    $region25: #{tpu_custom_call.1} parent=1 // pred_fallthru
      _
    // Predicated region
    $region26: #{tpu_custom_call.1} parent=1 // pred_check
      _
    $region27: #{tpu_custom_call.1} parent=1 // pred_check_branch
      %2132 = sbr.rel (0) target = $region29
    $region28: #{tpu_custom_call.1} parent=1 // pred_region
      %s2134 = ssub.s32 32, 32
      %2135 = vsyncadd [#allocation5], %s2134
      %s2137 = sshll.u32 [#allocation4], 4
      %s2138 = int_to_ptr.vmem [resolvable:$true] %s2137
      %2140 = dma.vmem_to_hbm [thread:$0]  %s2138, 32, %s4, [#allocation5]
    $region29: #{tpu_custom_call.1} parent=1 // pred_fallthru
      _
    // Predicated region
    $region30: #{tpu_custom_call.1} parent=1 // pred_check
      _
    $region31: #{tpu_custom_call.1} parent=1 // pred_check_branch
      %2142 = sbr.rel (0) target = $region33
    $region32: #{tpu_custom_call.1} parent=1 // pred_region
      %2143 = dma.done [#allocation5], 32
    $region33: #{tpu_custom_call.1} parent=1 // pred_fallthru
      _
    %2144 = vsyncpa [#allocation5], 1

</llo_original>
